<compile_context>
chip_gen: v7x
topology: tpu7x:2x2x1
jax: 0.10.0
libtpu: 0.0.40
codegen_flags: <defaults>
</compile_context>

<pallas_src>
import functools

import jax
import jax.numpy as jnp
from jax import lax
from jax.experimental import pallas as pl
from jax.experimental.pallas import tpu as pltpu


def _model_kernel(S, BP, D, H,
                  x_ref, wih_ref, whh_ref, b_ref,
                  convw_ref, convb_ref, wfc_ref, bfc_ref,
                  out_ref):
    """x@Wih hoist -> LSTM recurrence (vreg-resident) -> Conv1d(k=3,p=1) as
    three accumulated matmuls -> ReLU -> mean pool -> Linear (lane-dense)."""
    # --- Hoisted input projection (loop-invariant w.r.t. the h/c chain):
    #     one [S*BP, D] x [D, 4H] bf16 MXU matmul, bias folded in once.
    #     Kept as a vreg-resident value (no VMEM scratch round trip). ---
    xw = (jnp.dot(x_ref[...], wih_ref[...],
                  preferred_element_type=jnp.float32)
          + b_ref[...])                                    # [S*BP, 4H] f32

    whh = whh_ref[...]                                     # bf16 [H, 4H], resident

    # --- LSTM recurrence: h/c and the full h-history live in vregs. Python
    #     loop == full unroll at S=8, so all indexing below is static. ---
    h = jnp.zeros((BP, H), jnp.float32)
    c = jnp.zeros((BP, H), jnp.float32)
    hs = []
    for t in range(S):
        gates = xw[t * BP:(t + 1) * BP, :] + jnp.dot(
            h.astype(jnp.bfloat16), whh,
            preferred_element_type=jnp.float32)            # [BP, 4H]
        # Full-width EUP activations, then static lane slices (i, f, g, o).
        sg = jax.nn.sigmoid(gates)
        th = jnp.tanh(gates)
        i = sg[:, 0 * H:1 * H]
        f = sg[:, 1 * H:2 * H]
        g = th[:, 2 * H:3 * H]
        o = sg[:, 3 * H:4 * H]
        c = f * c + i * g
        h = o * jnp.tanh(c)
        hs.append(h)

    # --- Conv1d(H -> 128, kernel_size=3, padding=1): three accumulated
    #     [S*BP, H] x [H, 128] matmuls over the shifted taps. Tap arrays are
    #     built by stacking whole [BP, H] vreg blocks along the sublane axis
    #     (no lane-axis concatenate, no relayout). ---
    zero = jnp.zeros((BP, H), jnp.float32)
    prev = jnp.concatenate([zero] + hs[:-1], axis=0).astype(jnp.bfloat16)  # h_{t-1}
    mid = jnp.concatenate(hs, axis=0).astype(jnp.bfloat16)                 # h_t
    nxt = jnp.concatenate(hs[1:] + [zero], axis=0).astype(jnp.bfloat16)    # h_{t+1}
    conv = (jnp.dot(prev, convw_ref[0], preferred_element_type=jnp.float32)
            + jnp.dot(mid, convw_ref[1], preferred_element_type=jnp.float32)
            + jnp.dot(nxt, convw_ref[2], preferred_element_type=jnp.float32)
            + convb_ref[...])                              # [S*BP, 128]
    conv = jnp.maximum(conv, 0.0).reshape(S, BP, 128)      # ReLU
    pooled = jnp.mean(conv, axis=0)                        # mean over seq -> [BP, 128]

    # --- Final Linear, lane-dense (num_classes padded to 128 in the wrapper). ---
    out_ref[...] = (jnp.dot(pooled.astype(jnp.bfloat16), wfc_ref[...],
                            preferred_element_type=jnp.float32)
                    + bfc_ref[...])                        # [BP, CP]


def lstm_cnn_head(last_hidden, params):
    """last_hidden: [B, S, 768] float32 (BERT last_hidden_state) -> logits [B, C]."""
    B, S, D = last_hidden.shape
    H = params["whh"].shape[0]
    C = params["bfc"].shape[-1]
    CP = int(pl.cdiv(C, 128)) * 128                        # lane-dense output width
    BP = int(pl.cdiv(B, 8)) * 8                            # sublane-dense batch

    # Seq-major, batch padded to BP, flattened; bf16 MXU operands, f32 biases.
    x_sb = jnp.transpose(last_hidden, (1, 0, 2))                          # [S, B, D]
    x_sb = jnp.pad(x_sb, ((0, 0), (0, BP - B), (0, 0)))                   # [S, BP, D]
    x2d = x_sb.reshape(S * BP, D).astype(jnp.bfloat16)                    # [S*BP, D]

    wih = params["wih"].astype(jnp.bfloat16)                              # [D, 4H]
    whh = params["whh"].astype(jnp.bfloat16)                              # [H, 4H]
    b = params["b"].astype(jnp.float32)                                   # [1, 4H]
    convw = params["convw"].astype(jnp.bfloat16)                          # [3, H, 128]
    convb = params["convb"].astype(jnp.float32)                           # [1, 128]
    wfc = (jnp.zeros((128, CP), jnp.float32)
           .at[:, :C].set(params["wfc"]).astype(jnp.bfloat16))            # [128, CP]
    bfc = jnp.zeros((1, CP), jnp.float32).at[:, :C].set(params["bfc"])    # [1, CP]

    kernel = functools.partial(_model_kernel, S, BP, D, H)
    out_pad = pl.pallas_call(
        kernel,
        out_shape=jax.ShapeDtypeStruct((BP, CP), jnp.float32),
        in_specs=[pl.BlockSpec(memory_space=pltpu.MemorySpace.VMEM)] * 8,
        out_specs=pl.BlockSpec(memory_space=pltpu.MemorySpace.VMEM),
    )(x2d, wih, whh, b, convw, convb, wfc, bfc)
    return out_pad[:B, :C]


def init_params(key, hidden_dim, num_classes, d_model, vocab):
    """Deterministic synthetic parameters with the shapes implied by __init__."""
    ks = jax.random.split(key, 8)
    H = hidden_dim
    wih = 0.05 * jax.random.normal(ks[0], (d_model, 4 * H), jnp.float32)   # W_ih^T
    whh = 0.05 * jax.random.normal(ks[1], (H, 4 * H), jnp.float32)         # W_hh^T
    b = 0.05 * jax.random.normal(ks[2], (1, 4 * H), jnp.float32)           # b_ih + b_hh
    conv_w = 0.05 * jax.random.normal(ks[3], (128, H, 3), jnp.float32)     # PyTorch [O, I, K]
    convw = jnp.stack([conv_w[:, :, k].T for k in range(3)], axis=0)       # [3, H, 128]
    convb = 0.05 * jax.random.normal(ks[4], (1, 128), jnp.float32)
    wfc = 0.05 * jax.random.normal(ks[5], (128, num_classes), jnp.float32)
    bfc = 0.05 * jax.random.normal(ks[6], (1, num_classes), jnp.float32)
    emb = 0.5 * jax.random.normal(ks[7], (vocab, d_model), jnp.float32)    # BERT stub table
    return dict(wih=wih, whh=whh, b=b, convw=convw, convb=convb,
                wfc=wfc, bfc=bfc, emb=emb)


def reference(last_hidden, params):
    """Pure-JAX reference with the same bf16-matmul / f32-accumulate casts."""
    B, S, D = last_hidden.shape
    H = params["whh"].shape[0]
    wih = params["wih"].astype(jnp.bfloat16)
    whh = params["whh"].astype(jnp.bfloat16)
    b = params["b"]

    x_sb = jnp.transpose(last_hidden, (1, 0, 2)).astype(jnp.bfloat16)      # [S, B, D]
    xw = (jnp.dot(x_sb.reshape(S * B, D), wih,
                  preferred_element_type=jnp.float32) + b).reshape(S, B, 4 * H)

    def step(carry, xw_t):
        h, c = carry
        gates = xw_t + jnp.dot(h.astype(jnp.bfloat16), whh,
                               preferred_element_type=jnp.float32)
        sg = jax.nn.sigmoid(gates)
        th = jnp.tanh(gates)
        i, f = sg[:, :H], sg[:, H:2 * H]
        g, o = th[:, 2 * H:3 * H], sg[:, 3 * H:]
        c = f * c + i * g
        h = o * jnp.tanh(c)
        return (h, c), h

    h0 = jnp.zeros((B, H), jnp.float32)
    (_, _), hs = lax.scan(step, (h0, h0), xw)                              # [S, B, H]
    pad = jnp.pad(hs, ((1, 1), (0, 0), (0, 0))).astype(jnp.bfloat16)       # [S+2, B, H]
    convw = params["convw"].astype(jnp.bfloat16)                           # [3, H, 128]
    conv = sum(jnp.dot(pad[k:k + S].reshape(S * B, H), convw[k],
                       preferred_element_type=jnp.float32) for k in range(3))
    conv = jnp.maximum(conv + params["convb"], 0.0).reshape(S, B, 128)
    pooled = conv.mean(axis=0)                                             # [B, 128]
    return (jnp.dot(pooled.astype(jnp.bfloat16),
                    params["wfc"].astype(jnp.bfloat16),
                    preferred_element_type=jnp.float32) + params["bfc"][0])


if __name__ == "__main__":
    B, S = 2, 8               # batch, sequence length
    D_MODEL = 768             # IndicBERT hidden size (fixed by the module)
    HIDDEN = 32               # LSTM hidden_dim
    NUM_CLASSES = 4
    VOCAB = 64

    key = jax.random.PRNGKey(0)
    kp, ki = jax.random.split(key)
    params = init_params(kp, HIDDEN, NUM_CLASSES, D_MODEL, VOCAB)

    input_ids = jax.random.randint(ki, (B, S), 0, VOCAB)
    attention_mask = jnp.ones((B, S), jnp.float32)

    # BERT stub (frozen backbone): deterministic embedding lookup, masked.
    last_hidden = params["emb"][input_ids] * attention_mask[..., None]     # [B, S, 768]

    out = lstm_cnn_head(last_hidden, params)
    out = jax.block_until_ready(out)

    ref = reference(last_hidden, params)
    assert out.shape == (B, NUM_CLASSES), out.shape
    assert jnp.allclose(out, ref, rtol=2e-2, atol=2e-2), (out, ref)
    print("KERNEL_OK")
</pallas_src>

<mosaic_0001>
module attributes {stable_mosaic.version = 11 : i64} {
  func.func @_model_kernel(%arg0: memref<64x768xbf16, #tpu.memory_space<vmem>>, %arg1: memref<768x128xbf16, #tpu.memory_space<vmem>>, %arg2: memref<32x128xbf16, #tpu.memory_space<vmem>>, %arg3: memref<1x128xf32, #tpu.memory_space<vmem>>, %arg4: memref<3x32x128xbf16, #tpu.memory_space<vmem>>, %arg5: memref<1x128xf32, #tpu.memory_space<vmem>>, %arg6: memref<128x128xbf16, #tpu.memory_space<vmem>>, %arg7: memref<1x128xf32, #tpu.memory_space<vmem>>, %arg8: memref<8x128xf32, #tpu.memory_space<vmem>>) attributes {dimension_semantics = [], scalar_prefetch = 0 : i64, scratch_operands = 0 : i64, tpu.core_type = #tpu.core_type<tc>} {
    %c0 = arith.constant 0 : index
    %c0_0 = arith.constant 0 : index
    %0 = vector.load %arg0[%c0, %c0_0] : memref<64x768xbf16, #tpu.memory_space<vmem>>, vector<64x768xbf16>
    %c0_1 = arith.constant 0 : index
    %c0_2 = arith.constant 0 : index
    %1 = vector.load %arg1[%c0_1, %c0_2] : memref<768x128xbf16, #tpu.memory_space<vmem>>, vector<768x128xbf16>
    %cst = arith.constant dense<0.000000e+00> : vector<64x128xf32>
    %2 = tpu.matmul %0, %1, %cst {dimension_numbers = #tpu.dot_dimension_numbers<[1], [0], [0], [1], [0, 0, 1, 1], [], []>} : vector<64x768xbf16>, vector<768x128xbf16>, vector<64x128xf32> -> vector<64x128xf32>
    %c0_3 = arith.constant 0 : index
    %c0_4 = arith.constant 0 : index
    %3 = vector.load %arg3[%c0_3, %c0_4] : memref<1x128xf32, #tpu.memory_space<vmem>>, vector<1x128xf32>
    %4 = vector.broadcast %3 : vector<1x128xf32> to vector<64x128xf32>
    %5 = arith.addf %2, %4 : vector<64x128xf32>
    %c0_5 = arith.constant 0 : index
    %c0_6 = arith.constant 0 : index
    %6 = vector.load %arg2[%c0_5, %c0_6] : memref<32x128xbf16, #tpu.memory_space<vmem>>, vector<32x128xbf16>
    %cst_7 = arith.constant 0.000000e+00 : f32
    %7 = vector.broadcast %cst_7 : f32 to vector<8x32xf32>
    %cst_8 = arith.constant 0.000000e+00 : f32
    %8 = vector.broadcast %cst_8 : f32 to vector<8x32xf32>
    %9 = vector.extract_strided_slice %5 {offsets = [0, 0], sizes = [8, 128], strides = [1, 1]} : vector<64x128xf32> to vector<8x128xf32>
    %10 = arith.truncf %7 : vector<8x32xf32> to vector<8x32xbf16>
    %cst_9 = arith.constant dense<0.000000e+00> : vector<8x128xf32>
    %11 = tpu.matmul %10, %6, %cst_9 {dimension_numbers = #tpu.dot_dimension_numbers<[1], [0], [0], [1], [0, 0, 1, 1], [], []>} : vector<8x32xbf16>, vector<32x128xbf16>, vector<8x128xf32> -> vector<8x128xf32>
    %12 = arith.addf %9, %11 : vector<8x128xf32>
    %13 = arith.negf %12 : vector<8x128xf32>
    %14 = math.exp %13 : vector<8x128xf32>
    %cst_10 = arith.constant 1.000000e+00 : f32
    %15 = vector.broadcast %cst_10 : f32 to vector<8x128xf32>
    %16 = arith.addf %15, %14 : vector<8x128xf32>
    %17 = arith.divf %15, %16 : vector<8x128xf32>
    %18 = math.tanh %12 : vector<8x128xf32>
    %19 = vector.extract_strided_slice %17 {offsets = [0, 0], sizes = [8, 32], strides = [1, 1]} : vector<8x128xf32> to vector<8x32xf32>
    %20 = vector.extract_strided_slice %17 {offsets = [0, 32], sizes = [8, 32], strides = [1, 1]} : vector<8x128xf32> to vector<8x32xf32>
    %21 = vector.extract_strided_slice %18 {offsets = [0, 64], sizes = [8, 32], strides = [1, 1]} : vector<8x128xf32> to vector<8x32xf32>
    %22 = vector.extract_strided_slice %17 {offsets = [0, 96], sizes = [8, 32], strides = [1, 1]} : vector<8x128xf32> to vector<8x32xf32>
    %23 = arith.mulf %20, %8 : vector<8x32xf32>
    %24 = arith.mulf %19, %21 : vector<8x32xf32>
    %25 = arith.addf %23, %24 : vector<8x32xf32>
    %26 = math.tanh %25 : vector<8x32xf32>
    %27 = arith.mulf %22, %26 : vector<8x32xf32>
    %28 = vector.extract_strided_slice %5 {offsets = [8, 0], sizes = [8, 128], strides = [1, 1]} : vector<64x128xf32> to vector<8x128xf32>
    %29 = arith.truncf %27 : vector<8x32xf32> to vector<8x32xbf16>
    %cst_11 = arith.constant dense<0.000000e+00> : vector<8x128xf32>
    %30 = tpu.matmul %29, %6, %cst_11 {dimension_numbers = #tpu.dot_dimension_numbers<[1], [0], [0], [1], [0, 0, 1, 1], [], []>} : vector<8x32xbf16>, vector<32x128xbf16>, vector<8x128xf32> -> vector<8x128xf32>
    %31 = arith.addf %28, %30 : vector<8x128xf32>
    %32 = arith.negf %31 : vector<8x128xf32>
    %33 = math.exp %32 : vector<8x128xf32>
    %cst_12 = arith.constant 1.000000e+00 : f32
    %34 = vector.broadcast %cst_12 : f32 to vector<8x128xf32>
    %35 = arith.addf %34, %33 : vector<8x128xf32>
    %36 = arith.divf %34, %35 : vector<8x128xf32>
    %37 = math.tanh %31 : vector<8x128xf32>
    %38 = vector.extract_strided_slice %36 {offsets = [0, 0], sizes = [8, 32], strides = [1, 1]} : vector<8x128xf32> to vector<8x32xf32>
    %39 = vector.extract_strided_slice %36 {offsets = [0, 32], sizes = [8, 32], strides = [1, 1]} : vector<8x128xf32> to vector<8x32xf32>
    %40 = vector.extract_strided_slice %37 {offsets = [0, 64], sizes = [8, 32], strides = [1, 1]} : vector<8x128xf32> to vector<8x32xf32>
    %41 = vector.extract_strided_slice %36 {offsets = [0, 96], sizes = [8, 32], strides = [1, 1]} : vector<8x128xf32> to vector<8x32xf32>
    %42 = arith.mulf %39, %25 : vector<8x32xf32>
    %43 = arith.mulf %38, %40 : vector<8x32xf32>
    %44 = arith.addf %42, %43 : vector<8x32xf32>
    %45 = math.tanh %44 : vector<8x32xf32>
    %46 = arith.mulf %41, %45 : vector<8x32xf32>
    %47 = vector.extract_strided_slice %5 {offsets = [16, 0], sizes = [8, 128], strides = [1, 1]} : vector<64x128xf32> to vector<8x128xf32>
    %48 = arith.truncf %46 : vector<8x32xf32> to vector<8x32xbf16>
    %cst_13 = arith.constant dense<0.000000e+00> : vector<8x128xf32>
    %49 = tpu.matmul %48, %6, %cst_13 {dimension_numbers = #tpu.dot_dimension_numbers<[1], [0], [0], [1], [0, 0, 1, 1], [], []>} : vector<8x32xbf16>, vector<32x128xbf16>, vector<8x128xf32> -> vector<8x128xf32>
    %50 = arith.addf %47, %49 : vector<8x128xf32>
    %51 = arith.negf %50 : vector<8x128xf32>
    %52 = math.exp %51 : vector<8x128xf32>
    %cst_14 = arith.constant 1.000000e+00 : f32
    %53 = vector.broadcast %cst_14 : f32 to vector<8x128xf32>
    %54 = arith.addf %53, %52 : vector<8x128xf32>
    %55 = arith.divf %53, %54 : vector<8x128xf32>
    %56 = math.tanh %50 : vector<8x128xf32>
    %57 = vector.extract_strided_slice %55 {offsets = [0, 0], sizes = [8, 32], strides = [1, 1]} : vector<8x128xf32> to vector<8x32xf32>
    %58 = vector.extract_strided_slice %55 {offsets = [0, 32], sizes = [8, 32], strides = [1, 1]} : vector<8x128xf32> to vector<8x32xf32>
    %59 = vector.extract_strided_slice %56 {offsets = [0, 64], sizes = [8, 32], strides = [1, 1]} : vector<8x128xf32> to vector<8x32xf32>
    %60 = vector.extract_strided_slice %55 {offsets = [0, 96], sizes = [8, 32], strides = [1, 1]} : vector<8x128xf32> to vector<8x32xf32>
    %61 = arith.mulf %58, %44 : vector<8x32xf32>
    %62 = arith.mulf %57, %59 : vector<8x32xf32>
    %63 = arith.addf %61, %62 : vector<8x32xf32>
    %64 = math.tanh %63 : vector<8x32xf32>
    %65 = arith.mulf %60, %64 : vector<8x32xf32>
    %66 = vector.extract_strided_slice %5 {offsets = [24, 0], sizes = [8, 128], strides = [1, 1]} : vector<64x128xf32> to vector<8x128xf32>
    %67 = arith.truncf %65 : vector<8x32xf32> to vector<8x32xbf16>
    %cst_15 = arith.constant dense<0.000000e+00> : vector<8x128xf32>
    %68 = tpu.matmul %67, %6, %cst_15 {dimension_numbers = #tpu.dot_dimension_numbers<[1], [0], [0], [1], [0, 0, 1, 1], [], []>} : vector<8x32xbf16>, vector<32x128xbf16>, vector<8x128xf32> -> vector<8x128xf32>
    %69 = arith.addf %66, %68 : vector<8x128xf32>
    %70 = arith.negf %69 : vector<8x128xf32>
    %71 = math.exp %70 : vector<8x128xf32>
    %cst_16 = arith.constant 1.000000e+00 : f32
    %72 = vector.broadcast %cst_16 : f32 to vector<8x128xf32>
    %73 = arith.addf %72, %71 : vector<8x128xf32>
    %74 = arith.divf %72, %73 : vector<8x128xf32>
    %75 = math.tanh %69 : vector<8x128xf32>
    %76 = vector.extract_strided_slice %74 {offsets = [0, 0], sizes = [8, 32], strides = [1, 1]} : vector<8x128xf32> to vector<8x32xf32>
    %77 = vector.extract_strided_slice %74 {offsets = [0, 32], sizes = [8, 32], strides = [1, 1]} : vector<8x128xf32> to vector<8x32xf32>
    %78 = vector.extract_strided_slice %75 {offsets = [0, 64], sizes = [8, 32], strides = [1, 1]} : vector<8x128xf32> to vector<8x32xf32>
    %79 = vector.extract_strided_slice %74 {offsets = [0, 96], sizes = [8, 32], strides = [1, 1]} : vector<8x128xf32> to vector<8x32xf32>
    %80 = arith.mulf %77, %63 : vector<8x32xf32>
    %81 = arith.mulf %76, %78 : vector<8x32xf32>
    %82 = arith.addf %80, %81 : vector<8x32xf32>
    %83 = math.tanh %82 : vector<8x32xf32>
    %84 = arith.mulf %79, %83 : vector<8x32xf32>
    %85 = vector.extract_strided_slice %5 {offsets = [32, 0], sizes = [8, 128], strides = [1, 1]} : vector<64x128xf32> to vector<8x128xf32>
    %86 = arith.truncf %84 : vector<8x32xf32> to vector<8x32xbf16>
    %cst_17 = arith.constant dense<0.000000e+00> : vector<8x128xf32>
    %87 = tpu.matmul %86, %6, %cst_17 {dimension_numbers = #tpu.dot_dimension_numbers<[1], [0], [0], [1], [0, 0, 1, 1], [], []>} : vector<8x32xbf16>, vector<32x128xbf16>, vector<8x128xf32> -> vector<8x128xf32>
    %88 = arith.addf %85, %87 : vector<8x128xf32>
    %89 = arith.negf %88 : vector<8x128xf32>
    %90 = math.exp %89 : vector<8x128xf32>
    %cst_18 = arith.constant 1.000000e+00 : f32
    %91 = vector.broadcast %cst_18 : f32 to vector<8x128xf32>
    %92 = arith.addf %91, %90 : vector<8x128xf32>
    %93 = arith.divf %91, %92 : vector<8x128xf32>
    %94 = math.tanh %88 : vector<8x128xf32>
    %95 = vector.extract_strided_slice %93 {offsets = [0, 0], sizes = [8, 32], strides = [1, 1]} : vector<8x128xf32> to vector<8x32xf32>
    %96 = vector.extract_strided_slice %93 {offsets = [0, 32], sizes = [8, 32], strides = [1, 1]} : vector<8x128xf32> to vector<8x32xf32>
    %97 = vector.extract_strided_slice %94 {offsets = [0, 64], sizes = [8, 32], strides = [1, 1]} : vector<8x128xf32> to vector<8x32xf32>
    %98 = vector.extract_strided_slice %93 {offsets = [0, 96], sizes = [8, 32], strides = [1, 1]} : vector<8x128xf32> to vector<8x32xf32>
    %99 = arith.mulf %96, %82 : vector<8x32xf32>
    %100 = arith.mulf %95, %97 : vector<8x32xf32>
    %101 = arith.addf %99, %100 : vector<8x32xf32>
    %102 = math.tanh %101 : vector<8x32xf32>
    %103 = arith.mulf %98, %102 : vector<8x32xf32>
    %104 = vector.extract_strided_slice %5 {offsets = [40, 0], sizes = [8, 128], strides = [1, 1]} : vector<64x128xf32> to vector<8x128xf32>
    %105 = arith.truncf %103 : vector<8x32xf32> to vector<8x32xbf16>
    %cst_19 = arith.constant dense<0.000000e+00> : vector<8x128xf32>
    %106 = tpu.matmul %105, %6, %cst_19 {dimension_numbers = #tpu.dot_dimension_numbers<[1], [0], [0], [1], [0, 0, 1, 1], [], []>} : vector<8x32xbf16>, vector<32x128xbf16>, vector<8x128xf32> -> vector<8x128xf32>
    %107 = arith.addf %104, %106 : vector<8x128xf32>
    %108 = arith.negf %107 : vector<8x128xf32>
    %109 = math.exp %108 : vector<8x128xf32>
    %cst_20 = arith.constant 1.000000e+00 : f32
    %110 = vector.broadcast %cst_20 : f32 to vector<8x128xf32>
    %111 = arith.addf %110, %109 : vector<8x128xf32>
    %112 = arith.divf %110, %111 : vector<8x128xf32>
    %113 = math.tanh %107 : vector<8x128xf32>
    %114 = vector.extract_strided_slice %112 {offsets = [0, 0], sizes = [8, 32], strides = [1, 1]} : vector<8x128xf32> to vector<8x32xf32>
    %115 = vector.extract_strided_slice %112 {offsets = [0, 32], sizes = [8, 32], strides = [1, 1]} : vector<8x128xf32> to vector<8x32xf32>
    %116 = vector.extract_strided_slice %113 {offsets = [0, 64], sizes = [8, 32], strides = [1, 1]} : vector<8x128xf32> to vector<8x32xf32>
    %117 = vector.extract_strided_slice %112 {offsets = [0, 96], sizes = [8, 32], strides = [1, 1]} : vector<8x128xf32> to vector<8x32xf32>
    %118 = arith.mulf %115, %101 : vector<8x32xf32>
    %119 = arith.mulf %114, %116 : vector<8x32xf32>
    %120 = arith.addf %118, %119 : vector<8x32xf32>
    %121 = math.tanh %120 : vector<8x32xf32>
    %122 = arith.mulf %117, %121 : vector<8x32xf32>
    %123 = vector.extract_strided_slice %5 {offsets = [48, 0], sizes = [8, 128], strides = [1, 1]} : vector<64x128xf32> to vector<8x128xf32>
    %124 = arith.truncf %122 : vector<8x32xf32> to vector<8x32xbf16>
    %cst_21 = arith.constant dense<0.000000e+00> : vector<8x128xf32>
    %125 = tpu.matmul %124, %6, %cst_21 {dimension_numbers = #tpu.dot_dimension_numbers<[1], [0], [0], [1], [0, 0, 1, 1], [], []>} : vector<8x32xbf16>, vector<32x128xbf16>, vector<8x128xf32> -> vector<8x128xf32>
    %126 = arith.addf %123, %125 : vector<8x128xf32>
    %127 = arith.negf %126 : vector<8x128xf32>
    %128 = math.exp %127 : vector<8x128xf32>
    %cst_22 = arith.constant 1.000000e+00 : f32
    %129 = vector.broadcast %cst_22 : f32 to vector<8x128xf32>
    %130 = arith.addf %129, %128 : vector<8x128xf32>
    %131 = arith.divf %129, %130 : vector<8x128xf32>
    %132 = math.tanh %126 : vector<8x128xf32>
    %133 = vector.extract_strided_slice %131 {offsets = [0, 0], sizes = [8, 32], strides = [1, 1]} : vector<8x128xf32> to vector<8x32xf32>
    %134 = vector.extract_strided_slice %131 {offsets = [0, 32], sizes = [8, 32], strides = [1, 1]} : vector<8x128xf32> to vector<8x32xf32>
    %135 = vector.extract_strided_slice %132 {offsets = [0, 64], sizes = [8, 32], strides = [1, 1]} : vector<8x128xf32> to vector<8x32xf32>
    %136 = vector.extract_strided_slice %131 {offsets = [0, 96], sizes = [8, 32], strides = [1, 1]} : vector<8x128xf32> to vector<8x32xf32>
    %137 = arith.mulf %134, %120 : vector<8x32xf32>
    %138 = arith.mulf %133, %135 : vector<8x32xf32>
    %139 = arith.addf %137, %138 : vector<8x32xf32>
    %140 = math.tanh %139 : vector<8x32xf32>
    %141 = arith.mulf %136, %140 : vector<8x32xf32>
    %142 = vector.extract_strided_slice %5 {offsets = [56, 0], sizes = [8, 128], strides = [1, 1]} : vector<64x128xf32> to vector<8x128xf32>
    %143 = arith.truncf %141 : vector<8x32xf32> to vector<8x32xbf16>
    %cst_23 = arith.constant dense<0.000000e+00> : vector<8x128xf32>
    %144 = tpu.matmul %143, %6, %cst_23 {dimension_numbers = #tpu.dot_dimension_numbers<[1], [0], [0], [1], [0, 0, 1, 1], [], []>} : vector<8x32xbf16>, vector<32x128xbf16>, vector<8x128xf32> -> vector<8x128xf32>
    %145 = arith.addf %142, %144 : vector<8x128xf32>
    %146 = arith.negf %145 : vector<8x128xf32>
    %147 = math.exp %146 : vector<8x128xf32>
    %cst_24 = arith.constant 1.000000e+00 : f32
    %148 = vector.broadcast %cst_24 : f32 to vector<8x128xf32>
    %149 = arith.addf %148, %147 : vector<8x128xf32>
    %150 = arith.divf %148, %149 : vector<8x128xf32>
    %151 = math.tanh %145 : vector<8x128xf32>
    %152 = vector.extract_strided_slice %150 {offsets = [0, 0], sizes = [8, 32], strides = [1, 1]} : vector<8x128xf32> to vector<8x32xf32>
    %153 = vector.extract_strided_slice %150 {offsets = [0, 32], sizes = [8, 32], strides = [1, 1]} : vector<8x128xf32> to vector<8x32xf32>
    %154 = vector.extract_strided_slice %151 {offsets = [0, 64], sizes = [8, 32], strides = [1, 1]} : vector<8x128xf32> to vector<8x32xf32>
    %155 = vector.extract_strided_slice %150 {offsets = [0, 96], sizes = [8, 32], strides = [1, 1]} : vector<8x128xf32> to vector<8x32xf32>
    %156 = arith.mulf %153, %139 : vector<8x32xf32>
    %157 = arith.mulf %152, %154 : vector<8x32xf32>
    %158 = arith.addf %156, %157 : vector<8x32xf32>
    %159 = math.tanh %158 : vector<8x32xf32>
    %160 = arith.mulf %155, %159 : vector<8x32xf32>
    %cst_25 = arith.constant 0.000000e+00 : f32
    %161 = vector.broadcast %cst_25 : f32 to vector<8x32xf32>
    %162 = tpu.concatenate %161, %27, %46, %65, %84, %103, %122, %141 in 0 : vector<8x32xf32>, vector<8x32xf32>, vector<8x32xf32>, vector<8x32xf32>, vector<8x32xf32>, vector<8x32xf32>, vector<8x32xf32>, vector<8x32xf32> -> vector<64x32xf32>
    %163 = arith.truncf %162 : vector<64x32xf32> to vector<64x32xbf16>
    %164 = tpu.concatenate %27, %46, %65, %84, %103, %122, %141, %160 in 0 : vector<8x32xf32>, vector<8x32xf32>, vector<8x32xf32>, vector<8x32xf32>, vector<8x32xf32>, vector<8x32xf32>, vector<8x32xf32>, vector<8x32xf32> -> vector<64x32xf32>
    %165 = arith.truncf %164 : vector<64x32xf32> to vector<64x32xbf16>
    %166 = tpu.concatenate %46, %65, %84, %103, %122, %141, %160, %161 in 0 : vector<8x32xf32>, vector<8x32xf32>, vector<8x32xf32>, vector<8x32xf32>, vector<8x32xf32>, vector<8x32xf32>, vector<8x32xf32>, vector<8x32xf32> -> vector<64x32xf32>
    %167 = arith.truncf %166 : vector<64x32xf32> to vector<64x32xbf16>
    %c0_26 = arith.constant 0 : index
    %c0_27 = arith.constant 0 : index
    %c0_28 = arith.constant 0 : index
    %168 = vector.load %arg4[%c0_26, %c0_27, %c0_28] : memref<3x32x128xbf16, #tpu.memory_space<vmem>>, vector<1x32x128xbf16>
    %169 = vector.shape_cast %168 : vector<1x32x128xbf16> to vector<32x128xbf16>
    %cst_29 = arith.constant dense<0.000000e+00> : vector<64x128xf32>
    %170 = tpu.matmul %163, %169, %cst_29 {dimension_numbers = #tpu.dot_dimension_numbers<[1], [0], [0], [1], [0, 0, 1, 1], [], []>} : vector<64x32xbf16>, vector<32x128xbf16>, vector<64x128xf32> -> vector<64x128xf32>
    %c1 = arith.constant 1 : index
    %c0_30 = arith.constant 0 : index
    %c0_31 = arith.constant 0 : index
    %171 = vector.load %arg4[%c1, %c0_30, %c0_31] : memref<3x32x128xbf16, #tpu.memory_space<vmem>>, vector<1x32x128xbf16>
    %172 = vector.shape_cast %171 : vector<1x32x128xbf16> to vector<32x128xbf16>
    %cst_32 = arith.constant dense<0.000000e+00> : vector<64x128xf32>
    %173 = tpu.matmul %165, %172, %cst_32 {dimension_numbers = #tpu.dot_dimension_numbers<[1], [0], [0], [1], [0, 0, 1, 1], [], []>} : vector<64x32xbf16>, vector<32x128xbf16>, vector<64x128xf32> -> vector<64x128xf32>
    %174 = arith.addf %170, %173 : vector<64x128xf32>
    %c2 = arith.constant 2 : index
    %c0_33 = arith.constant 0 : index
    %c0_34 = arith.constant 0 : index
    %175 = vector.load %arg4[%c2, %c0_33, %c0_34] : memref<3x32x128xbf16, #tpu.memory_space<vmem>>, vector<1x32x128xbf16>
    %176 = vector.shape_cast %175 : vector<1x32x128xbf16> to vector<32x128xbf16>
    %cst_35 = arith.constant dense<0.000000e+00> : vector<64x128xf32>
    %177 = tpu.matmul %167, %176, %cst_35 {dimension_numbers = #tpu.dot_dimension_numbers<[1], [0], [0], [1], [0, 0, 1, 1], [], []>} : vector<64x32xbf16>, vector<32x128xbf16>, vector<64x128xf32> -> vector<64x128xf32>
    %178 = arith.addf %174, %177 : vector<64x128xf32>
    %c0_36 = arith.constant 0 : index
    %c0_37 = arith.constant 0 : index
    %179 = vector.load %arg5[%c0_36, %c0_37] : memref<1x128xf32, #tpu.memory_space<vmem>>, vector<1x128xf32>
    %180 = vector.broadcast %179 : vector<1x128xf32> to vector<64x128xf32>
    %181 = arith.addf %178, %180 : vector<64x128xf32>
    %cst_38 = arith.constant 0.000000e+00 : f32
    %182 = vector.broadcast %cst_38 : f32 to vector<64x128xf32>
    %183 = arith.maximumf %181, %182 : vector<64x128xf32>
    %184 = vector.shape_cast %183 : vector<64x128xf32> to vector<8x8x128xf32>
    %cst_39 = arith.constant dense<0.000000e+00> : vector<8x128xf32>
    %185 = vector.multi_reduction <add>, %184, %cst_39 [0] : vector<8x8x128xf32> to vector<8x128xf32>
    %cst_40 = arith.constant 8.000000e+00 : f32
    %186 = vector.broadcast %cst_40 : f32 to vector<8x128xf32>
    %187 = arith.divf %185, %186 : vector<8x128xf32>
    %188 = arith.truncf %187 : vector<8x128xf32> to vector<8x128xbf16>
    %c0_41 = arith.constant 0 : index
    %c0_42 = arith.constant 0 : index
    %189 = vector.load %arg6[%c0_41, %c0_42] : memref<128x128xbf16, #tpu.memory_space<vmem>>, vector<128x128xbf16>
    %cst_43 = arith.constant dense<0.000000e+00> : vector<8x128xf32>
    %190 = tpu.matmul %188, %189, %cst_43 {dimension_numbers = #tpu.dot_dimension_numbers<[1], [0], [0], [1], [0, 0, 1, 1], [], []>} : vector<8x128xbf16>, vector<128x128xbf16>, vector<8x128xf32> -> vector<8x128xf32>
    %c0_44 = arith.constant 0 : index
    %c0_45 = arith.constant 0 : index
    %191 = vector.load %arg7[%c0_44, %c0_45] : memref<1x128xf32, #tpu.memory_space<vmem>>, vector<1x128xf32>
    %192 = vector.broadcast %191 : vector<1x128xf32> to vector<8x128xf32>
    %193 = arith.addf %190, %192 : vector<8x128xf32>
    %c0_46 = arith.constant 0 : index
    %c0_47 = arith.constant 0 : index
    %194 = vector.load %arg8[%c0_46, %c0_47] : memref<8x128xf32, #tpu.memory_space<vmem>>, vector<8x128xf32>
    tpu.vector_store %arg8[%c0_46, %c0_47], %193 {strides = array<i32>} : memref<8x128xf32, #tpu.memory_space<vmem>>, vector<8x128xf32>,
    return
  }
}

</mosaic_0001>

<llo_original>
// kernel: tpu_custom_call.1
$region0: #{tpu_custom_call.1}
  #allocation0 [shape = 'u32[]', space=smem, size = 0x4, offset = 0x4, fixed_abs, tag = 'smem constant byte address 0x4 - core index']
  #allocation1 [shape = 'u32[144,128]{1,0:T(1,128)}', space=vmem, size = 0x12000, scoped, tag = 'internal scratch']
  %s0 = inlined_call_operand.hbm [shape: bf16[64,768], index: 0, kind: input, shape index: {}]
  %s1 = inlined_call_operand.hbm [shape: bf16[768,128], index: 1, kind: input, shape index: {}]
  %s2 = inlined_call_operand.hbm [shape: bf16[32,128], index: 2, kind: input, shape index: {}]
  %s3 = inlined_call_operand.vmem [shape: f32[1,128], index: 3, kind: input, shape index: {}]
  %s4 = inlined_call_operand.hbm [shape: bf16[3,32,128], index: 4, kind: input, shape index: {}]
  %s5 = inlined_call_operand.vmem [shape: f32[1,128], index: 5, kind: input, shape index: {}]
  %s6 = inlined_call_operand.hbm [shape: bf16[128,128], index: 6, kind: input, shape index: {}]
  %s7 = inlined_call_operand.vmem [shape: f32[1,128], index: 7, kind: input, shape index: {}]
  %s8 = inlined_call_operand.hbm [shape: f32[8,128], index: 8, kind: output, shape index: {}]
  %s9 = sld [smem:[#allocation0]]
  $region62: #{tpu_custom_call.1} parent=0
    _
  %s11 = ssub.s32 1, %s9
  %s12 = scalar_select 0, %s11, %s9
  $region1: #{tpu_custom_call.1} parent=0
    #allocation2 [shape = 'u8[98304]{0}', space=vmem, size = 0x18000, scoped, tag = 'input window, operand 0, single buffered']
    #allocation3 [shape = 's32[1]{0}', space=sflag, size = 0x4, scoped, tag = 'scoped memory for tpu_custom_call.1']
    #allocation4 [shape = 's32[1]{0}', space=sflag, size = 0x4, scoped, tag = 'scoped memory for tpu_custom_call.1']
    #allocation5 [shape = 'u8[196608]{0}', space=vmem, size = 0x30000, scoped, tag = 'input window, operand 1, single buffered']
    #allocation6 [shape = 's32[1]{0}', space=sflag, size = 0x4, scoped, tag = 'scoped memory for tpu_custom_call.1']
    #allocation7 [shape = 'u8[8192]{0}', space=vmem, size = 0x2000, scoped, tag = 'input window, operand 2, single buffered']
    #allocation8 [shape = 'u8[24576]{0}', space=vmem, size = 0x6000, scoped, tag = 'input window, operand 4, single buffered']
    #allocation9 [shape = 's32[1]{0}', space=sflag, size = 0x4, scoped, tag = 'scoped memory for tpu_custom_call.1']
    #allocation10 [shape = 'u8[32768]{0}', space=vmem, size = 0x8000, scoped, tag = 'input window, operand 6, single buffered']
    #allocation11 [shape = 'u8[4096]{0}', space=vmem, size = 0x1000, scoped, tag = 'output window, operand 0, single buffered']
    %13 = vsyncpa [#allocation3], 0
    %14 = vsyncpa [#allocation6], 0
    %15 = vsyncpa [#allocation9], 0
    %16 = vsyncpa [#allocation4], 0
    // Predicated region
    $region2: #{tpu_custom_call.1} parent=1 // pred_check
      _
    $region3: #{tpu_custom_call.1} parent=1 // pred_check_branch
      %18 = sbr.rel (0) target = $region5
    $region4: #{tpu_custom_call.1} parent=1 // pred_region
      %s20 = ssub.s32 3072, 3072
      %21 = vsyncadd [#allocation3], %s20
      %s22 = sshll.u32 [#allocation2], 4
      %s23 = int_to_ptr.vmem [resolvable:$true] %s22
      %28 = dma.hbm_to_vmem [thread:$0]  %s0, 3072, %s23, [#allocation3], 384, 384, 24
    $region5: #{tpu_custom_call.1} parent=1 // pred_fallthru
      _
    // Predicated region
    $region6: #{tpu_custom_call.1} parent=1 // pred_check
      _
    $region7: #{tpu_custom_call.1} parent=1 // pred_check_branch
      %30 = sbr.rel (0) target = $region9
    $region8: #{tpu_custom_call.1} parent=1 // pred_region
      %s32 = ssub.s32 6144, 6144
      %33 = vsyncadd [#allocation6], %s32
      %s34 = sshll.u32 [#allocation5], 4
      %s35 = int_to_ptr.vmem [resolvable:$true] %s34
      %40 = dma.hbm_to_vmem [thread:$0]  %s1, 6144, %s35, [#allocation6], 64, 64, 4
    $region9: #{tpu_custom_call.1} parent=1 // pred_fallthru
      _
    // Predicated region
    $region10: #{tpu_custom_call.1} parent=1 // pred_check
      _
    $region11: #{tpu_custom_call.1} parent=1 // pred_check_branch
      %42 = sbr.rel (0) target = $region13
    $region12: #{tpu_custom_call.1} parent=1 // pred_region
      %s44 = ssub.s32 256, 256
      %45 = vsyncadd [#allocation6], %s44
      %s46 = sshll.u32 [#allocation7], 4
      %s47 = int_to_ptr.vmem [resolvable:$true] %s46
      %52 = dma.hbm_to_vmem [thread:$0]  %s2, 256, %s47, [#allocation6], 64, 64, 4
    $region13: #{tpu_custom_call.1} parent=1 // pred_fallthru
      _
    // Predicated region
    $region14: #{tpu_custom_call.1} parent=1 // pred_check
      _
    $region15: #{tpu_custom_call.1} parent=1 // pred_check_branch
      %54 = sbr.rel (0) target = $region17
    $region16: #{tpu_custom_call.1} parent=1 // pred_region
      _
    $region17: #{tpu_custom_call.1} parent=1 // pred_fallthru
      _
    // Predicated region
    $region18: #{tpu_custom_call.1} parent=1 // pred_check
      _
    $region19: #{tpu_custom_call.1} parent=1 // pred_check_branch
      %56 = sbr.rel (0) target = $region21
    $region20: #{tpu_custom_call.1} parent=1 // pred_region
      %s58 = ssub.s32 768, 768
      %59 = vsyncadd [#allocation9], %s58
      %s60 = sshll.u32 [#allocation8], 4
      %s61 = int_to_ptr.vmem [resolvable:$true] %s60
      %66 = dma.hbm_to_vmem [thread:$0]  %s4, 768, %s61, [#allocation9], 64, 64, 4
    $region21: #{tpu_custom_call.1} parent=1 // pred_fallthru
      _
    // Predicated region
    $region22: #{tpu_custom_call.1} parent=1 // pred_check
      _
    $region23: #{tpu_custom_call.1} parent=1 // pred_check_branch
      %68 = sbr.rel (0) target = $region25
    $region24: #{tpu_custom_call.1} parent=1 // pred_region
      _
    $region25: #{tpu_custom_call.1} parent=1 // pred_fallthru
      _
    // Predicated region
    $region26: #{tpu_custom_call.1} parent=1 // pred_check
      _
    $region27: #{tpu_custom_call.1} parent=1 // pred_check_branch
      %70 = sbr.rel (0) target = $region29
    $region28: #{tpu_custom_call.1} parent=1 // pred_region
      %s72 = ssub.s32 1024, 1024
      %73 = vsyncadd [#allocation9], %s72
      %s74 = sshll.u32 [#allocation10], 4
      %s75 = int_to_ptr.vmem [resolvable:$true] %s74
      %80 = dma.hbm_to_vmem [thread:$0]  %s6, 1024, %s75, [#allocation9], 64, 64, 4
    $region29: #{tpu_custom_call.1} parent=1 // pred_fallthru
      _
    // Predicated region
    $region30: #{tpu_custom_call.1} parent=1 // pred_check
      _
    $region31: #{tpu_custom_call.1} parent=1 // pred_check_branch
      %82 = sbr.rel (0) target = $region33
    $region32: #{tpu_custom_call.1} parent=1 // pred_region
      _
    $region33: #{tpu_custom_call.1} parent=1 // pred_fallthru
      _
    // Predicated region
    $region34: #{tpu_custom_call.1} parent=1 // pred_check
      _
    $region35: #{tpu_custom_call.1} parent=1 // pred_check_branch
      %84 = sbr.rel (0) target = $region37
    $region36: #{tpu_custom_call.1} parent=1 // pred_region
      %85 = dma.done [#allocation3], 3072
    $region37: #{tpu_custom_call.1} parent=1 // pred_fallthru
      _
    // Predicated region
    $region38: #{tpu_custom_call.1} parent=1 // pred_check
      _
    $region39: #{tpu_custom_call.1} parent=1 // pred_check_branch
      %87 = sbr.rel (0) target = $region41
    $region40: #{tpu_custom_call.1} parent=1 // pred_region
      %88 = dma.done [#allocation6], 6144
    $region41: #{tpu_custom_call.1} parent=1 // pred_fallthru
      _
    // Predicated region
    $region42: #{tpu_custom_call.1} parent=1 // pred_check
      _
    $region43: #{tpu_custom_call.1} parent=1 // pred_check_branch
      %90 = sbr.rel (0) target = $region45
    $region44: #{tpu_custom_call.1} parent=1 // pred_region
      %91 = dma.done [#allocation6], 256
    $region45: #{tpu_custom_call.1} parent=1 // pred_fallthru
      _
    // Predicated region
    $region46: #{tpu_custom_call.1} parent=1 // pred_check
      _
    $region47: #{tpu_custom_call.1} parent=1 // pred_check_branch
      %93 = sbr.rel (0) target = $region49
    $region48: #{tpu_custom_call.1} parent=1 // pred_region
      %94 = dma.done [#allocation9], 768
    $region49: #{tpu_custom_call.1} parent=1 // pred_fallthru
      _
    // Predicated region
    $region50: #{tpu_custom_call.1} parent=1 // pred_check
      _
    $region51: #{tpu_custom_call.1} parent=1 // pred_check_branch
      %96 = sbr.rel (0) target = $region53
    $region52: #{tpu_custom_call.1} parent=1 // pred_region
      %97 = dma.done [#allocation9], 1024
    $region53: #{tpu_custom_call.1} parent=1 // pred_fallthru
      _
    %v99 = vld [vmem:[#allocation2] sm:$0xff]
    %v100 = vld [vmem:[#allocation2 + $0x8] sm:$0xff]
    %v101 = vld [vmem:[#allocation2 + $0x10] sm:$0xff]
    %v102 = vld [vmem:[#allocation2 + $0x18] sm:$0xff]
    %v103 = vld [vmem:[#allocation2 + $0x20] sm:$0xff]
    %v104 = vld [vmem:[#allocation2 + $0x28] sm:$0xff]
    %v105 = vld [vmem:[#allocation2 + $0x30] sm:$0xff]
    %v106 = vld [vmem:[#allocation2 + $0x38] sm:$0xff]
    %v107 = vld [vmem:[#allocation2 + $0x40] sm:$0xff]
    %v108 = vld [vmem:[#allocation2 + $0x48] sm:$0xff]
    %v109 = vld [vmem:[#allocation2 + $0x50] sm:$0xff]
    %v110 = vld [vmem:[#allocation2 + $0x58] sm:$0xff]
    %v111 = vld [vmem:[#allocation2 + $0x60] sm:$0xff]
    %v112 = vld [vmem:[#allocation2 + $0x68] sm:$0xff]
    %v113 = vld [vmem:[#allocation2 + $0x70] sm:$0xff]
    %v114 = vld [vmem:[#allocation2 + $0x78] sm:$0xff]
    %v115 = vld [vmem:[#allocation2 + $0x80] sm:$0xff]
    %v116 = vld [vmem:[#allocation2 + $0x88] sm:$0xff]
    %v117 = vld [vmem:[#allocation2 + $0x90] sm:$0xff]
    %v118 = vld [vmem:[#allocation2 + $0x98] sm:$0xff]
    %v119 = vld [vmem:[#allocation2 + $0xa0] sm:$0xff]
    %v120 = vld [vmem:[#allocation2 + $0xa8] sm:$0xff]
    %v121 = vld [vmem:[#allocation2 + $0xb0] sm:$0xff]
    %v122 = vld [vmem:[#allocation2 + $0xb8] sm:$0xff]
    %v123 = vld [vmem:[#allocation5] sm:$0xf]
    %v124 = vld [vmem:[#allocation5 + $0x4] sm:$0xf]
    %v125 = vld [vmem:[#allocation5 + $0x8] sm:$0xf]
    %v126 = vld [vmem:[#allocation5 + $0xc] sm:$0xf]
    %v127 = vld [vmem:[#allocation5 + $0x10] sm:$0xf]
    %v128 = vld [vmem:[#allocation5 + $0x14] sm:$0xf]
    %v129 = vld [vmem:[#allocation5 + $0x18] sm:$0xf]
    %v130 = vld [vmem:[#allocation5 + $0x1c] sm:$0xf]
    %v131 = vld [vmem:[#allocation5 + $0x20] sm:$0xf]
    %v132 = vld [vmem:[#allocation5 + $0x24] sm:$0xf]
    %v133 = vld [vmem:[#allocation5 + $0x28] sm:$0xf]
    %v134 = vld [vmem:[#allocation5 + $0x2c] sm:$0xf]
    %v135 = vld [vmem:[#allocation5 + $0x30] sm:$0xf]
    %v136 = vld [vmem:[#allocation5 + $0x34] sm:$0xf]
    %v137 = vld [vmem:[#allocation5 + $0x38] sm:$0xf]
    %v138 = vld [vmem:[#allocation5 + $0x3c] sm:$0xf]
    %v139 = vld [vmem:[#allocation5 + $0x40] sm:$0xf]
    %v140 = vld [vmem:[#allocation5 + $0x44] sm:$0xf]
    %v141 = vld [vmem:[#allocation5 + $0x48] sm:$0xf]
    %v142 = vld [vmem:[#allocation5 + $0x4c] sm:$0xf]
    %v143 = vld [vmem:[#allocation5 + $0x50] sm:$0xf]
    %v144 = vld [vmem:[#allocation5 + $0x54] sm:$0xf]
    %v145 = vld [vmem:[#allocation5 + $0x58] sm:$0xf]
    %v146 = vld [vmem:[#allocation5 + $0x5c] sm:$0xf]
    %v147 = vld [vmem:[#allocation5 + $0x60] sm:$0xf]
    %v148 = vld [vmem:[#allocation5 + $0x64] sm:$0xf]
    %v149 = vld [vmem:[#allocation5 + $0x68] sm:$0xf]
    %v150 = vld [vmem:[#allocation5 + $0x6c] sm:$0xf]
    %v151 = vld [vmem:[#allocation5 + $0x70] sm:$0xf]
    %v152 = vld [vmem:[#allocation5 + $0x74] sm:$0xf]
    %v153 = vld [vmem:[#allocation5 + $0x78] sm:$0xf]
    %v154 = vld [vmem:[#allocation5 + $0x7c] sm:$0xf]
    %v155 = vld [vmem:[#allocation5 + $0x80] sm:$0xf]
    %v156 = vld [vmem:[#allocation5 + $0x84] sm:$0xf]
    %v157 = vld [vmem:[#allocation5 + $0x88] sm:$0xf]
    %v158 = vld [vmem:[#allocation5 + $0x8c] sm:$0xf]
    %v159 = vld [vmem:[#allocation5 + $0x90] sm:$0xf]
    %v160 = vld [vmem:[#allocation5 + $0x94] sm:$0xf]
    %v161 = vld [vmem:[#allocation5 + $0x98] sm:$0xf]
    %v162 = vld [vmem:[#allocation5 + $0x9c] sm:$0xf]
    %v163 = vld [vmem:[#allocation5 + $0xa0] sm:$0xf]
    %v164 = vld [vmem:[#allocation5 + $0xa4] sm:$0xf]
    %v165 = vld [vmem:[#allocation5 + $0xa8] sm:$0xf]
    %v166 = vld [vmem:[#allocation5 + $0xac] sm:$0xf]
    %v167 = vld [vmem:[#allocation5 + $0xb0] sm:$0xf]
    %v168 = vld [vmem:[#allocation5 + $0xb4] sm:$0xf]
    %v169 = vld [vmem:[#allocation5 + $0xb8] sm:$0xf]
    %v170 = vld [vmem:[#allocation5 + $0xbc] sm:$0xf]
    %v171 = vld [vmem:[#allocation5 + $0xc0] sm:$0xf]
    %v172 = vld [vmem:[#allocation5 + $0xc4] sm:$0xf]
    %v173 = vld [vmem:[#allocation5 + $0xc8] sm:$0xf]
    %v174 = vld [vmem:[#allocation5 + $0xcc] sm:$0xf]
    %v175 = vld [vmem:[#allocation5 + $0xd0] sm:$0xf]
    %v176 = vld [vmem:[#allocation5 + $0xd4] sm:$0xf]
    %v177 = vld [vmem:[#allocation5 + $0xd8] sm:$0xf]
    %v178 = vld [vmem:[#allocation5 + $0xdc] sm:$0xf]
    %v179 = vld [vmem:[#allocation5 + $0xe0] sm:$0xf]
    %v180 = vld [vmem:[#allocation5 + $0xe4] sm:$0xf]
    %v181 = vld [vmem:[#allocation5 + $0xe8] sm:$0xf]
    %v182 = vld [vmem:[#allocation5 + $0xec] sm:$0xf]
    %v183 = vld [vmem:[#allocation5 + $0xf0] sm:$0xf]
    %v184 = vld [vmem:[#allocation5 + $0xf4] sm:$0xf]
    %v185 = vld [vmem:[#allocation5 + $0xf8] sm:$0xf]
    %v186 = vld [vmem:[#allocation5 + $0xfc] sm:$0xf]
    %v187 = vld [vmem:[#allocation5 + $0x100] sm:$0xf]
    %v188 = vld [vmem:[#allocation5 + $0x104] sm:$0xf]
    %v189 = vld [vmem:[#allocation5 + $0x108] sm:$0xf]
    %v190 = vld [vmem:[#allocation5 + $0x10c] sm:$0xf]
    %v191 = vld [vmem:[#allocation5 + $0x110] sm:$0xf]
    %v192 = vld [vmem:[#allocation5 + $0x114] sm:$0xf]
    %v193 = vld [vmem:[#allocation5 + $0x118] sm:$0xf]
    %v194 = vld [vmem:[#allocation5 + $0x11c] sm:$0xf]
    %v195 = vld [vmem:[#allocation5 + $0x120] sm:$0xf]
    %v196 = vld [vmem:[#allocation5 + $0x124] sm:$0xf]
    %v197 = vld [vmem:[#allocation5 + $0x128] sm:$0xf]
    %v198 = vld [vmem:[#allocation5 + $0x12c] sm:$0xf]
    %v199 = vld [vmem:[#allocation5 + $0x130] sm:$0xf]
    %v200 = vld [vmem:[#allocation5 + $0x134] sm:$0xf]
    %v201 = vld [vmem:[#allocation5 + $0x138] sm:$0xf]
    %v202 = vld [vmem:[#allocation5 + $0x13c] sm:$0xf]
    %v203 = vld [vmem:[#allocation5 + $0x140] sm:$0xf]
    %v204 = vld [vmem:[#allocation5 + $0x144] sm:$0xf]
    %v205 = vld [vmem:[#allocation5 + $0x148] sm:$0xf]
    %v206 = vld [vmem:[#allocation5 + $0x14c] sm:$0xf]
    %v207 = vld [vmem:[#allocation5 + $0x150] sm:$0xf]
    %v208 = vld [vmem:[#allocation5 + $0x154] sm:$0xf]
    %v209 = vld [vmem:[#allocation5 + $0x158] sm:$0xf]
    %v210 = vld [vmem:[#allocation5 + $0x15c] sm:$0xf]
    %v211 = vld [vmem:[#allocation5 + $0x160] sm:$0xf]
    %v212 = vld [vmem:[#allocation5 + $0x164] sm:$0xf]
    %v213 = vld [vmem:[#allocation5 + $0x168] sm:$0xf]
    %v214 = vld [vmem:[#allocation5 + $0x16c] sm:$0xf]
    %v215 = vld [vmem:[#allocation5 + $0x170] sm:$0xf]
    %v216 = vld [vmem:[#allocation5 + $0x174] sm:$0xf]
    %v217 = vld [vmem:[#allocation5 + $0x178] sm:$0xf]
    %v218 = vld [vmem:[#allocation5 + $0x17c] sm:$0xf]
    %v219 = vld [vmem:[%s3] sm:$0x1]
    %v221 = vlaneseq
    %v222 = vshrl.u32 %v221, 7
    %v223 = vsub.s32 0, %v222
    %v224 = vrot.slane %v219, %v223
    %v250 = vunpack.c.l.b16 %v99
    %v251 = vunpack.c.h.b16 %v99
    %v252 = vunpack.c.l.b16 %v100
    %v253 = vunpack.c.h.b16 %v100
    %v254 = vunpack.c.l.b16 %v101
    %v255 = vunpack.c.h.b16 %v101
    %v256 = vunpack.c.l.b16 %v102
    %v257 = vunpack.c.h.b16 %v102
    %v258 = vunpack.c.l.b16 %v103
    %v259 = vunpack.c.h.b16 %v103
    %v260 = vunpack.c.l.b16 %v104
    %v261 = vunpack.c.h.b16 %v104
    %v262 = vunpack.c.l.b16 %v105
    %v263 = vunpack.c.h.b16 %v105
    %v264 = vunpack.c.l.b16 %v106
    %v265 = vunpack.c.h.b16 %v106
    %v266 = vunpack.c.l.b16 %v107
    %v267 = vunpack.c.h.b16 %v107
    %v268 = vunpack.c.l.b16 %v108
    %v269 = vunpack.c.h.b16 %v108
    %v270 = vunpack.c.l.b16 %v109
    %v271 = vunpack.c.h.b16 %v109
    %v272 = vunpack.c.l.b16 %v110
    %v273 = vunpack.c.h.b16 %v110
    %v274 = vunpack.c.l.b16 %v111
    %v275 = vunpack.c.h.b16 %v111
    %v276 = vunpack.c.l.b16 %v112
    %v277 = vunpack.c.h.b16 %v112
    %v278 = vunpack.c.l.b16 %v113
    %v279 = vunpack.c.h.b16 %v113
    %v280 = vunpack.c.l.b16 %v114
    %v281 = vunpack.c.h.b16 %v114
    %v282 = vunpack.c.l.b16 %v115
    %v283 = vunpack.c.h.b16 %v115
    %v284 = vunpack.c.l.b16 %v116
    %v285 = vunpack.c.h.b16 %v116
    %v286 = vunpack.c.l.b16 %v117
    %v287 = vunpack.c.h.b16 %v117
    %v288 = vunpack.c.l.b16 %v118
    %v289 = vunpack.c.h.b16 %v118
    %v290 = vunpack.c.l.b16 %v119
    %v291 = vunpack.c.h.b16 %v119
    %v292 = vunpack.c.l.b16 %v120
    %v293 = vunpack.c.h.b16 %v120
    %v294 = vunpack.c.l.b16 %v121
    %v295 = vunpack.c.h.b16 %v121
    %v296 = vunpack.c.l.b16 %v122
    %v297 = vunpack.c.h.b16 %v122
    %v298 = vpack.c.b16 %v256, %v250
    %v299 = vpack.c.b16 %v257, %v251
    %v300 = vpack.c.b16 %v258, %v252
    %v301 = vpack.c.b16 %v259, %v253
    %v302 = vpack.c.b16 %v260, %v254
    %v303 = vpack.c.b16 %v261, %v255
    %v304 = vpack.c.b16 %v268, %v262
    %v305 = vpack.c.b16 %v269, %v263
    %v306 = vpack.c.b16 %v270, %v264
    %v307 = vpack.c.b16 %v271, %v265
    %v308 = vpack.c.b16 %v272, %v266
    %v309 = vpack.c.b16 %v273, %v267
    %v310 = vpack.c.b16 %v280, %v274
    %v311 = vpack.c.b16 %v281, %v275
    %v312 = vpack.c.b16 %v282, %v276
    %v313 = vpack.c.b16 %v283, %v277
    %v314 = vpack.c.b16 %v284, %v278
    %v315 = vpack.c.b16 %v285, %v279
    %v316 = vpack.c.b16 %v292, %v286
    %v317 = vpack.c.b16 %v293, %v287
    %v318 = vpack.c.b16 %v294, %v288
    %v319 = vpack.c.b16 %v295, %v289
    %v320 = vpack.c.b16 %v296, %v290
    %v321 = vpack.c.b16 %v297, %v291
    %v442 = vunpack.c.l.b16 %v123
    %v443 = vunpack.c.l.b16 %v124
    %v444 = vunpack.c.l.b16 %v125
    %v445 = vunpack.c.l.b16 %v126
    %v446 = vunpack.c.l.b16 %v127
    %v447 = vunpack.c.l.b16 %v128
    %v448 = vunpack.c.l.b16 %v129
    %v449 = vunpack.c.l.b16 %v130
    %v450 = vunpack.c.l.b16 %v131
    %v451 = vunpack.c.l.b16 %v132
    %v452 = vunpack.c.l.b16 %v133
    %v453 = vunpack.c.l.b16 %v134
    %v454 = vunpack.c.l.b16 %v135
    %v455 = vunpack.c.l.b16 %v136
    %v456 = vunpack.c.l.b16 %v137
    %v457 = vunpack.c.l.b16 %v138
    %v458 = vunpack.c.l.b16 %v139
    %v459 = vunpack.c.l.b16 %v140
    %v460 = vunpack.c.l.b16 %v141
    %v461 = vunpack.c.l.b16 %v142
    %v462 = vunpack.c.l.b16 %v143
    %v463 = vunpack.c.l.b16 %v144
    %v464 = vunpack.c.l.b16 %v145
    %v465 = vunpack.c.l.b16 %v146
    %v466 = vunpack.c.l.b16 %v147
    %v467 = vunpack.c.l.b16 %v148
    %v468 = vunpack.c.l.b16 %v149
    %v469 = vunpack.c.l.b16 %v150
    %v470 = vunpack.c.l.b16 %v151
    %v471 = vunpack.c.l.b16 %v152
    %v472 = vunpack.c.l.b16 %v153
    %v473 = vunpack.c.l.b16 %v154
    %v474 = vunpack.c.l.b16 %v155
    %v475 = vunpack.c.l.b16 %v156
    %v476 = vunpack.c.l.b16 %v157
    %v477 = vunpack.c.l.b16 %v158
    %v478 = vunpack.c.l.b16 %v159
    %v479 = vunpack.c.l.b16 %v160
    %v480 = vunpack.c.l.b16 %v161
    %v481 = vunpack.c.l.b16 %v162
    %v482 = vunpack.c.l.b16 %v163
    %v483 = vunpack.c.l.b16 %v164
    %v484 = vunpack.c.l.b16 %v165
    %v485 = vunpack.c.l.b16 %v166
    %v486 = vunpack.c.l.b16 %v167
    %v487 = vunpack.c.l.b16 %v168
    %v488 = vunpack.c.l.b16 %v169
    %v489 = vunpack.c.l.b16 %v170
    %v490 = vunpack.c.l.b16 %v171
    %v491 = vunpack.c.l.b16 %v172
    %v492 = vunpack.c.l.b16 %v173
    %v493 = vunpack.c.l.b16 %v174
    %v494 = vunpack.c.l.b16 %v175
    %v495 = vunpack.c.l.b16 %v176
    %v496 = vunpack.c.l.b16 %v177
    %v497 = vunpack.c.l.b16 %v178
    %v498 = vunpack.c.l.b16 %v179
    %v499 = vunpack.c.l.b16 %v180
    %v500 = vunpack.c.l.b16 %v181
    %v501 = vunpack.c.l.b16 %v182
    %v502 = vunpack.c.l.b16 %v183
    %v503 = vunpack.c.l.b16 %v184
    %v504 = vunpack.c.l.b16 %v185
    %v505 = vunpack.c.l.b16 %v186
    %v506 = vunpack.c.l.b16 %v187
    %v507 = vunpack.c.l.b16 %v188
    %v508 = vunpack.c.l.b16 %v189
    %v509 = vunpack.c.l.b16 %v190
    %v510 = vunpack.c.l.b16 %v191
    %v511 = vunpack.c.l.b16 %v192
    %v512 = vunpack.c.l.b16 %v193
    %v513 = vunpack.c.l.b16 %v194
    %v514 = vunpack.c.l.b16 %v195
    %v515 = vunpack.c.l.b16 %v196
    %v516 = vunpack.c.l.b16 %v197
    %v517 = vunpack.c.l.b16 %v198
    %v518 = vunpack.c.l.b16 %v199
    %v519 = vunpack.c.l.b16 %v200
    %v520 = vunpack.c.l.b16 %v201
    %v521 = vunpack.c.l.b16 %v202
    %v522 = vunpack.c.l.b16 %v203
    %v523 = vunpack.c.l.b16 %v204
    %v524 = vunpack.c.l.b16 %v205
    %v525 = vunpack.c.l.b16 %v206
    %v526 = vunpack.c.l.b16 %v207
    %v527 = vunpack.c.l.b16 %v208
    %v528 = vunpack.c.l.b16 %v209
    %v529 = vunpack.c.l.b16 %v210
    %v530 = vunpack.c.l.b16 %v211
    %v531 = vunpack.c.l.b16 %v212
    %v532 = vunpack.c.l.b16 %v213
    %v533 = vunpack.c.l.b16 %v214
    %v534 = vunpack.c.l.b16 %v215
    %v535 = vunpack.c.l.b16 %v216
    %v536 = vunpack.c.l.b16 %v217
    %v537 = vunpack.c.l.b16 %v218
    %v538 = vpack.c.b16 %v443, %v442
    %v539 = vpack.c.b16 %v445, %v444
    %v540 = vpack.c.b16 %v447, %v446
    %v541 = vpack.c.b16 %v449, %v448
    %v542 = vpack.c.b16 %v451, %v450
    %v543 = vpack.c.b16 %v453, %v452
    %v544 = vpack.c.b16 %v455, %v454
    %v545 = vpack.c.b16 %v457, %v456
    %v546 = vpack.c.b16 %v459, %v458
    %v547 = vpack.c.b16 %v461, %v460
    %v548 = vpack.c.b16 %v463, %v462
    %v549 = vpack.c.b16 %v465, %v464
    %v550 = vpack.c.b16 %v467, %v466
    %v551 = vpack.c.b16 %v469, %v468
    %v552 = vpack.c.b16 %v471, %v470
    %v553 = vpack.c.b16 %v473, %v472
    %v554 = vpack.c.b16 %v475, %v474
    %v555 = vpack.c.b16 %v477, %v476
    %v556 = vpack.c.b16 %v479, %v478
    %v557 = vpack.c.b16 %v481, %v480
    %v558 = vpack.c.b16 %v483, %v482
    %v559 = vpack.c.b16 %v485, %v484
    %v560 = vpack.c.b16 %v487, %v486
    %v561 = vpack.c.b16 %v489, %v488
    %v562 = vpack.c.b16 %v491, %v490
    %v563 = vpack.c.b16 %v493, %v492
    %v564 = vpack.c.b16 %v495, %v494
    %v565 = vpack.c.b16 %v497, %v496
    %v566 = vpack.c.b16 %v499, %v498
    %v567 = vpack.c.b16 %v501, %v500
    %v568 = vpack.c.b16 %v503, %v502
    %v569 = vpack.c.b16 %v505, %v504
    %v570 = vpack.c.b16 %v507, %v506
    %v571 = vpack.c.b16 %v509, %v508
    %v572 = vpack.c.b16 %v511, %v510
    %v573 = vpack.c.b16 %v513, %v512
    %v574 = vpack.c.b16 %v515, %v514
    %v575 = vpack.c.b16 %v517, %v516
    %v576 = vpack.c.b16 %v519, %v518
    %v577 = vpack.c.b16 %v521, %v520
    %v578 = vpack.c.b16 %v523, %v522
    %v579 = vpack.c.b16 %v525, %v524
    %v580 = vpack.c.b16 %v527, %v526
    %v581 = vpack.c.b16 %v529, %v528
    %v582 = vpack.c.b16 %v531, %v530
    %v583 = vpack.c.b16 %v533, %v532
    %v584 = vpack.c.b16 %v535, %v534
    %v585 = vpack.c.b16 %v537, %v536
    %634 = vmatprep.subr.bf16.mxu0 0
    %635 = vmatpush1.bf16.msra.mxu0 %v538
    %636 = vmatprep.subr.bf16.mxu0 0
    %637 = vmatpush1.bf16.msra.mxu0 %v539
    %638 = vmatprep.subr.bf16.mxu0 0
    %639 = vmatpush1.bf16.msra.mxu0 %v540
    %640 = vmatprep.subr.bf16.mxu0 0
    %641 = vmatpush1.bf16.msra.mxu0 %v541
    %642 = vmatprep.subr.bf16.mxu0 0
    %643 = vmatpush1.bf16.msra.mxu0 %v542
    %644 = vmatprep.subr.bf16.mxu0 0
    %645 = vmatpush1.bf16.msra.mxu0 %v543
    %646 = vmatprep.subr.bf16.mxu0 0
    %647 = vmatpush1.bf16.msra.mxu0 %v544
    %648 = vmatprep.subr.bf16.mxu0 0
    %649 = vmatpush1.bf16.msra.mxu0 %v545
    %650 = vmatprep.subr.bf16.mxu0 0
    %651 = vmatpush1.bf16.msra.mxu0 %v546
    %652 = vmatprep.subr.bf16.mxu0 0
    %653 = vmatpush1.bf16.msra.mxu0 %v547
    %654 = vmatprep.subr.bf16.mxu0 0
    %655 = vmatpush1.bf16.msra.mxu0 %v548
    %656 = vmatprep.subr.bf16.mxu0 0
    %657 = vmatpush1.bf16.msra.mxu0 %v549
    %658 = vmatprep.subr.bf16.mxu0 0
    %659 = vmatpush1.bf16.msra.mxu0 %v550
    %660 = vmatprep.subr.bf16.mxu0 0
    %661 = vmatpush1.bf16.msra.mxu0 %v551
    %662 = vmatprep.subr.bf16.mxu0 0
    %663 = vmatpush1.bf16.msra.mxu0 %v552
    %664 = vmatprep.subr.bf16.mxu0 0
    %665 = vmatpush1.bf16.msra.mxu0 %v553
    %666 = vmatprep.mubr.bf16.mxu0 %v299
    %667 = vmatmul.mubr.bf16.gmra.mrb[0].mxu0 %v298
    %v668 = vpop.f32.mrb[0].mxu0
    %v669 = vadd.f32 %v224, %v668
    %v670 = vpop.f32.mrb[0].mxu0
    %v671 = vpop.f32.mrb[0].mxu0
    %v672 = vadd.f32 %v224, %v671
    %v673 = vpop.f32.mrb[0].mxu0
    %674 = vmatprep.mubr.bf16.mxu0 %v305
    %675 = vmatmul.mubr.bf16.gmra.mrb[0].mxu0 %v304
    %v676 = vpop.f32.mrb[0].mxu0
    %v677 = vadd.f32 %v224, %v676
    %v678 = vpop.f32.mrb[0].mxu0
    %v679 = vpop.f32.mrb[0].mxu0
    %v680 = vadd.f32 %v224, %v679
    %v681 = vpop.f32.mrb[0].mxu0
    %682 = vmatprep.mubr.bf16.mxu0 %v311
    %683 = vmatmul.mubr.bf16.gmra.mrb[0].mxu0 %v310
    %v684 = vpop.f32.mrb[0].mxu0
    %v685 = vadd.f32 %v224, %v684
    %v686 = vpop.f32.mrb[0].mxu0
    %v687 = vpop.f32.mrb[0].mxu0
    %v688 = vadd.f32 %v224, %v687
    %v689 = vpop.f32.mrb[0].mxu0
    %690 = vmatprep.mubr.bf16.mxu0 %v317
    %691 = vmatmul.mubr.bf16.gmra.mrb[0].mxu0 %v316
    %v692 = vpop.f32.mrb[0].mxu0
    %v693 = vadd.f32 %v224, %v692
    %v694 = vpop.f32.mrb[0].mxu0
    %v695 = vpop.f32.mrb[0].mxu0
    %v696 = vadd.f32 %v224, %v695
    %v697 = vpop.f32.mrb[0].mxu0
    %698 = vdwg.mxu0
    %699 = vmatprep.subr.bf16.mxu0 0
    %700 = vmatpush1.bf16.msra.mxu0 %v554
    %701 = vmatprep.subr.bf16.mxu0 0
    %702 = vmatpush1.bf16.msra.mxu0 %v555
    %703 = vmatprep.subr.bf16.mxu0 0
    %704 = vmatpush1.bf16.msra.mxu0 %v556
    %705 = vmatprep.subr.bf16.mxu0 0
    %706 = vmatpush1.bf16.msra.mxu0 %v557
    %707 = vmatprep.subr.bf16.mxu0 0
    %708 = vmatpush1.bf16.msra.mxu0 %v558
    %709 = vmatprep.subr.bf16.mxu0 0
    %710 = vmatpush1.bf16.msra.mxu0 %v559
    %711 = vmatprep.subr.bf16.mxu0 0
    %712 = vmatpush1.bf16.msra.mxu0 %v560
    %713 = vmatprep.subr.bf16.mxu0 0
    %714 = vmatpush1.bf16.msra.mxu0 %v561
    %715 = vmatprep.subr.bf16.mxu0 0
    %716 = vmatpush1.bf16.msra.mxu0 %v562
    %717 = vmatprep.subr.bf16.mxu0 0
    %718 = vmatpush1.bf16.msra.mxu0 %v563
    %719 = vmatprep.subr.bf16.mxu0 0
    %720 = vmatpush1.bf16.msra.mxu0 %v564
    %721 = vmatprep.subr.bf16.mxu0 0
    %722 = vmatpush1.bf16.msra.mxu0 %v565
    %723 = vmatprep.subr.bf16.mxu0 0
    %724 = vmatpush1.bf16.msra.mxu0 %v566
    %725 = vmatprep.subr.bf16.mxu0 0
    %726 = vmatpush1.bf16.msra.mxu0 %v567
    %727 = vmatprep.subr.bf16.mxu0 0
    %728 = vmatpush1.bf16.msra.mxu0 %v568
    %729 = vmatprep.subr.bf16.mxu0 0
    %730 = vmatpush1.bf16.msra.mxu0 %v569
    %731 = vmatprep.mubr.bf16.mxu0 %v301
    %732 = vmatmul.mubr.bf16.gmra.mrb[0].mxu0 %v300
    %v733 = vpop.f32.mrb[0].mxu0
    %v734 = vadd.f32 %v669, %v733
    %v735 = vpop.f32.mrb[0].mxu0
    %v736 = vpop.f32.mrb[0].mxu0
    %v737 = vadd.f32 %v672, %v736
    %v738 = vpop.f32.mrb[0].mxu0
    %739 = vmatprep.mubr.bf16.mxu0 %v307
    %740 = vmatmul.mubr.bf16.gmra.mrb[0].mxu0 %v306
    %v741 = vpop.f32.mrb[0].mxu0
    %v742 = vadd.f32 %v677, %v741
    %v743 = vpop.f32.mrb[0].mxu0
    %v744 = vpop.f32.mrb[0].mxu0
    %v745 = vadd.f32 %v680, %v744
    %v746 = vpop.f32.mrb[0].mxu0
    %747 = vmatprep.mubr.bf16.mxu0 %v313
    %748 = vmatmul.mubr.bf16.gmra.mrb[0].mxu0 %v312
    %v749 = vpop.f32.mrb[0].mxu0
    %v750 = vadd.f32 %v685, %v749
    %v751 = vpop.f32.mrb[0].mxu0
    %v752 = vpop.f32.mrb[0].mxu0
    %v753 = vadd.f32 %v688, %v752
    %v754 = vpop.f32.mrb[0].mxu0
    %755 = vmatprep.mubr.bf16.mxu0 %v319
    %756 = vmatmul.mubr.bf16.gmra.mrb[0].mxu0 %v318
    %v757 = vpop.f32.mrb[0].mxu0
    %v758 = vadd.f32 %v693, %v757
    %v759 = vpop.f32.mrb[0].mxu0
    %v760 = vpop.f32.mrb[0].mxu0
    %v761 = vadd.f32 %v696, %v760
    %v762 = vpop.f32.mrb[0].mxu0
    %763 = vdwg.mxu0
    %764 = vmatprep.subr.bf16.mxu0 0
    %765 = vmatpush1.bf16.msra.mxu0 %v570
    %766 = vmatprep.subr.bf16.mxu0 0
    %767 = vmatpush1.bf16.msra.mxu0 %v571
    %768 = vmatprep.subr.bf16.mxu0 0
    %769 = vmatpush1.bf16.msra.mxu0 %v572
    %770 = vmatprep.subr.bf16.mxu0 0
    %771 = vmatpush1.bf16.msra.mxu0 %v573
    %772 = vmatprep.subr.bf16.mxu0 0
    %773 = vmatpush1.bf16.msra.mxu0 %v574
    %774 = vmatprep.subr.bf16.mxu0 0
    %775 = vmatpush1.bf16.msra.mxu0 %v575
    %776 = vmatprep.subr.bf16.mxu0 0
    %777 = vmatpush1.bf16.msra.mxu0 %v576
    %778 = vmatprep.subr.bf16.mxu0 0
    %779 = vmatpush1.bf16.msra.mxu0 %v577
    %780 = vmatprep.subr.bf16.mxu0 0
    %781 = vmatpush1.bf16.msra.mxu0 %v578
    %782 = vmatprep.subr.bf16.mxu0 0
    %783 = vmatpush1.bf16.msra.mxu0 %v579
    %784 = vmatprep.subr.bf16.mxu0 0
    %785 = vmatpush1.bf16.msra.mxu0 %v580
    %786 = vmatprep.subr.bf16.mxu0 0
    %787 = vmatpush1.bf16.msra.mxu0 %v581
    %788 = vmatprep.subr.bf16.mxu0 0
    %789 = vmatpush1.bf16.msra.mxu0 %v582
    %790 = vmatprep.subr.bf16.mxu0 0
    %791 = vmatpush1.bf16.msra.mxu0 %v583
    %792 = vmatprep.subr.bf16.mxu0 0
    %793 = vmatpush1.bf16.msra.mxu0 %v584
    %794 = vmatprep.subr.bf16.mxu0 0
    %795 = vmatpush1.bf16.msra.mxu0 %v585
    %796 = vmatprep.mubr.bf16.mxu0 %v303
    %797 = vmatmul.mubr.bf16.gmra.mrb[0].mxu0 %v302
    %v798 = vpop.f32.mrb[0].mxu0
    %v799 = vadd.f32 %v734, %v798
    %v800 = vpop.f32.mrb[0].mxu0
    %v801 = vpop.f32.mrb[0].mxu0
    %v802 = vadd.f32 %v737, %v801
    %v803 = vpop.f32.mrb[0].mxu0
    %804 = vmatprep.mubr.bf16.mxu0 %v309
    %805 = vmatmul.mubr.bf16.gmra.mrb[0].mxu0 %v308
    %v806 = vpop.f32.mrb[0].mxu0
    %v807 = vadd.f32 %v742, %v806
    %v808 = vpop.f32.mrb[0].mxu0
    %v809 = vpop.f32.mrb[0].mxu0
    %v810 = vadd.f32 %v745, %v809
    %v811 = vpop.f32.mrb[0].mxu0
    %812 = vmatprep.mubr.bf16.mxu0 %v315
    %813 = vmatmul.mubr.bf16.gmra.mrb[0].mxu0 %v314
    %v814 = vpop.f32.mrb[0].mxu0
    %v815 = vadd.f32 %v750, %v814
    %v816 = vpop.f32.mrb[0].mxu0
    %v817 = vpop.f32.mrb[0].mxu0
    %v818 = vadd.f32 %v753, %v817
    %v819 = vpop.f32.mrb[0].mxu0
    %820 = vmatprep.mubr.bf16.mxu0 %v321
    %821 = vmatmul.mubr.bf16.gmra.mrb[0].mxu0 %v320
    %v822 = vpop.f32.mrb[0].mxu0
    %v823 = vadd.f32 %v758, %v822
    %v824 = vpop.f32.mrb[0].mxu0
    %v825 = vpop.f32.mrb[0].mxu0
    %v826 = vadd.f32 %v761, %v825
    %v827 = vpop.f32.mrb[0].mxu0
    %828 = vdwg.mxu0
    %v829 = vld [vmem:[#allocation7] sm:$0xf]
    %v830 = vld [vmem:[#allocation7 + $0x4] sm:$0xf]
    %v831 = vld [vmem:[#allocation7 + $0x8] sm:$0xf]
    %v832 = vld [vmem:[#allocation7 + $0xc] sm:$0xf]
    %v837 = vunpack.c.l.b16 %v829
    %v838 = vunpack.c.l.b16 %v830
    %v839 = vunpack.c.l.b16 %v831
    %v840 = vunpack.c.l.b16 %v832
    %v841 = vpack.c.b16 %v838, %v837
    %v842 = vpack.c.b16 %v840, %v839
    %vm845 = vcmask 261120
    %v847 = vsel %vm845, 0, 0
    %849 = vmatprep.subr.bf16.mxu0 0
    %850 = vmatpush1.bf16.msra.mxu0 %v841
    %851 = vmatprep.subr.bf16.mxu0 0
    %852 = vmatpush1.bf16.msra.mxu0 %v842
    %853 = vmatprep.subr.bf16.mxu0 0
    %854 = vmatpush1.bf16.msra.mxu0 0
    %855 = vmatprep.subr.bf16.mxu0 0
    %856 = vmatpush1.bf16.msra.mxu0 0
    %857 = vmatprep.subr.bf16.mxu0 0
    %858 = vmatpush1.bf16.msra.mxu0 0
    %859 = vmatprep.subr.bf16.mxu0 0
    %860 = vmatpush1.bf16.msra.mxu0 0
    %861 = vmatprep.subr.bf16.mxu0 0
    %862 = vmatpush1.bf16.msra.mxu0 0
    %863 = vmatprep.subr.bf16.mxu0 0
    %864 = vmatpush1.bf16.msra.mxu0 0
    %865 = vmatprep.subr.bf16.mxu0 0
    %866 = vmatpush1.bf16.msra.mxu0 0
    %867 = vmatprep.subr.bf16.mxu0 0
    %868 = vmatpush1.bf16.msra.mxu0 0
    %869 = vmatprep.subr.bf16.mxu0 0
    %870 = vmatpush1.bf16.msra.mxu0 0
    %871 = vmatprep.subr.bf16.mxu0 0
    %872 = vmatpush1.bf16.msra.mxu0 0
    %873 = vmatprep.subr.bf16.mxu0 0
    %874 = vmatpush1.bf16.msra.mxu0 0
    %875 = vmatprep.subr.bf16.mxu0 0
    %876 = vmatpush1.bf16.msra.mxu0 0
    %877 = vmatprep.subr.bf16.mxu0 0
    %878 = vmatpush1.bf16.msra.mxu0 0
    %879 = vmatprep.subr.bf16.mxu0 0
    %880 = vmatpush1.bf16.msra.mxu0 0
    %881 = vmatprep.mubr.bf16.mxu0 0
    %882 = vmatmul.mubr.bf16.gmra.mrb[0].mxu0 %v847
    %v883 = vpop.f32.mrb[0].mxu0
    %v884 = vadd.f32 0.0, %v883
    %v885 = vpop.f32.mrb[0].mxu0
    %v886 = vpop.f32.mrb[0].mxu0
    %v887 = vpop.f32.mrb[0].mxu0
    %888 = vdwg.mxu0
    %v889 = vadd.f32 %v799, %v884
    %v890 = vxor.u32 %v889, 2147483648
    %v891 = vmul.f32 %v890, 1.442695
    %v892 = vpow.pop %v891
    %v893 = vadd.f32 %v892, 1.0
    %v894 = vrcp.pop %v893
    %v895 = vmul.f32 1.0, %v894
    %v896 = vtanh.pop %v889
    %v897 = vmul.f32 %v895, 0.0
    %899 = vrot.lane.b32.xlu0 %v896, 64
    %v900 = vpop.permute.xlu0 %899
    %v902 = vmul.f32 %v895, %v900
    %904 = vrot.lane.b32.xlu0 %v902, 32
    %v905 = vpop.permute.xlu0 %904
    %v907 = vadd.f32 %v897, %v905
    %v908 = vtanh.pop %v907
    %910 = vrot.lane.b32.xlu0 %v908, 64
    %v911 = vpop.permute.xlu0 %910
    %v913 = vmul.f32 %v895, %v911
    %v914 = vpack.c.bf16 %v913, %v913
    %916 = vrot.lane.b32.xlu0 %v914, 32
    %v917 = vpop.permute.xlu0 %916
    %v919 = vsel %vm845, %v917, 0
    %921 = vmatprep.subr.bf16.mxu0 0
    %922 = vmatpush1.bf16.msra.mxu0 %v841
    %923 = vmatprep.subr.bf16.mxu0 0
    %924 = vmatpush1.bf16.msra.mxu0 %v842
    %925 = vmatprep.subr.bf16.mxu0 0
    %926 = vmatpush1.bf16.msra.mxu0 0
    %927 = vmatprep.subr.bf16.mxu0 0
    %928 = vmatpush1.bf16.msra.mxu0 0
    %929 = vmatprep.subr.bf16.mxu0 0
    %930 = vmatpush1.bf16.msra.mxu0 0
    %931 = vmatprep.subr.bf16.mxu0 0
    %932 = vmatpush1.bf16.msra.mxu0 0
    %933 = vmatprep.subr.bf16.mxu0 0
    %934 = vmatpush1.bf16.msra.mxu0 0
    %935 = vmatprep.subr.bf16.mxu0 0
    %936 = vmatpush1.bf16.msra.mxu0 0
    %937 = vmatprep.subr.bf16.mxu0 0
    %938 = vmatpush1.bf16.msra.mxu0 0
    %939 = vmatprep.subr.bf16.mxu0 0
    %940 = vmatpush1.bf16.msra.mxu0 0
    %941 = vmatprep.subr.bf16.mxu0 0
    %942 = vmatpush1.bf16.msra.mxu0 0
    %943 = vmatprep.subr.bf16.mxu0 0
    %944 = vmatpush1.bf16.msra.mxu0 0
    %945 = vmatprep.subr.bf16.mxu0 0
    %946 = vmatpush1.bf16.msra.mxu0 0
    %947 = vmatprep.subr.bf16.mxu0 0
    %948 = vmatpush1.bf16.msra.mxu0 0
    %949 = vmatprep.subr.bf16.mxu0 0
    %950 = vmatpush1.bf16.msra.mxu0 0
    %951 = vmatprep.subr.bf16.mxu0 0
    %952 = vmatpush1.bf16.msra.mxu0 0
    %953 = vmatprep.mubr.bf16.mxu0 0
    %954 = vmatmul.mubr.bf16.gmra.mrb[0].mxu0 %v919
    %v955 = vpop.f32.mrb[0].mxu0
    %v956 = vadd.f32 0.0, %v955
    %v957 = vpop.f32.mrb[0].mxu0
    %v958 = vpop.f32.mrb[0].mxu0
    %v959 = vpop.f32.mrb[0].mxu0
    %960 = vdwg.mxu0
    %v961 = vadd.f32 %v802, %v956
    %v962 = vxor.u32 %v961, 2147483648
    %v963 = vmul.f32 %v962, 1.442695
    %v964 = vpow.pop %v963
    %v965 = vadd.f32 %v964, 1.0
    %v966 = vrcp.pop %v965
    %v967 = vmul.f32 1.0, %v966
    %v968 = vtanh.pop %v961
    %v969 = vmul.f32 %v967, %v907
    %971 = vrot.lane.b32.xlu0 %v968, 64
    %v972 = vpop.permute.xlu0 %971
    %v974 = vmul.f32 %v967, %v972
    %976 = vrot.lane.b32.xlu0 %v974, 32
    %v977 = vpop.permute.xlu0 %976
    %v979 = vadd.f32 %v969, %v977
    %v980 = vtanh.pop %v979
    %982 = vrot.lane.b32.xlu0 %v980, 64
    %v983 = vpop.permute.xlu0 %982
    %v985 = vmul.f32 %v967, %v983
    %v986 = vpack.c.bf16 %v985, %v985
    %988 = vrot.lane.b32.xlu0 %v986, 32
    %v989 = vpop.permute.xlu0 %988
    %v991 = vsel %vm845, %v989, 0
    %993 = vmatprep.subr.bf16.mxu0 0
    %994 = vmatpush1.bf16.msra.mxu0 %v841
    %995 = vmatprep.subr.bf16.mxu0 0
    %996 = vmatpush1.bf16.msra.mxu0 %v842
    %997 = vmatprep.subr.bf16.mxu0 0
    %998 = vmatpush1.bf16.msra.mxu0 0
    %999 = vmatprep.subr.bf16.mxu0 0
    %1000 = vmatpush1.bf16.msra.mxu0 0
    %1001 = vmatprep.subr.bf16.mxu0 0
    %1002 = vmatpush1.bf16.msra.mxu0 0
    %1003 = vmatprep.subr.bf16.mxu0 0
    %1004 = vmatpush1.bf16.msra.mxu0 0
    %1005 = vmatprep.subr.bf16.mxu0 0
    %1006 = vmatpush1.bf16.msra.mxu0 0
    %1007 = vmatprep.subr.bf16.mxu0 0
    %1008 = vmatpush1.bf16.msra.mxu0 0
    %1009 = vmatprep.subr.bf16.mxu0 0
    %1010 = vmatpush1.bf16.msra.mxu0 0
    %1011 = vmatprep.subr.bf16.mxu0 0
    %1012 = vmatpush1.bf16.msra.mxu0 0
    %1013 = vmatprep.subr.bf16.mxu0 0
    %1014 = vmatpush1.bf16.msra.mxu0 0
    %1015 = vmatprep.subr.bf16.mxu0 0
    %1016 = vmatpush1.bf16.msra.mxu0 0
    %1017 = vmatprep.subr.bf16.mxu0 0
    %1018 = vmatpush1.bf16.msra.mxu0 0
    %1019 = vmatprep.subr.bf16.mxu0 0
    %1020 = vmatpush1.bf16.msra.mxu0 0
    %1021 = vmatprep.subr.bf16.mxu0 0
    %1022 = vmatpush1.bf16.msra.mxu0 0
    %1023 = vmatprep.subr.bf16.mxu0 0
    %1024 = vmatpush1.bf16.msra.mxu0 0
    %1025 = vmatprep.mubr.bf16.mxu0 0
    %1026 = vmatmul.mubr.bf16.gmra.mrb[0].mxu0 %v991
    %v1027 = vpop.f32.mrb[0].mxu0
    %v1028 = vadd.f32 0.0, %v1027
    %v1029 = vpop.f32.mrb[0].mxu0
    %v1030 = vpop.f32.mrb[0].mxu0
    %v1031 = vpop.f32.mrb[0].mxu0
    %1032 = vdwg.mxu0
    %v1033 = vadd.f32 %v807, %v1028
    %v1034 = vxor.u32 %v1033, 2147483648
    %v1035 = vmul.f32 %v1034, 1.442695
    %v1036 = vpow.pop %v1035
    %v1037 = vadd.f32 %v1036, 1.0
    %v1038 = vrcp.pop %v1037
    %v1039 = vmul.f32 1.0, %v1038
    %v1040 = vtanh.pop %v1033
    %v1041 = vmul.f32 %v1039, %v979
    %1043 = vrot.lane.b32.xlu0 %v1040, 64
    %v1044 = vpop.permute.xlu0 %1043
    %v1046 = vmul.f32 %v1039, %v1044
    %1048 = vrot.lane.b32.xlu0 %v1046, 32
    %v1049 = vpop.permute.xlu0 %1048
    %v1051 = vadd.f32 %v1041, %v1049
    %v1052 = vtanh.pop %v1051
    %1054 = vrot.lane.b32.xlu0 %v1052, 64
    %v1055 = vpop.permute.xlu0 %1054
    %v1057 = vmul.f32 %v1039, %v1055
    %v1058 = vpack.c.bf16 %v1057, %v1057
    %1060 = vrot.lane.b32.xlu0 %v1058, 32
    %v1061 = vpop.permute.xlu0 %1060
    %v1063 = vsel %vm845, %v1061, 0
    %1065 = vmatprep.subr.bf16.mxu0 0
    %1066 = vmatpush1.bf16.msra.mxu0 %v841
    %1067 = vmatprep.subr.bf16.mxu0 0
    %1068 = vmatpush1.bf16.msra.mxu0 %v842
    %1069 = vmatprep.subr.bf16.mxu0 0
    %1070 = vmatpush1.bf16.msra.mxu0 0
    %1071 = vmatprep.subr.bf16.mxu0 0
    %1072 = vmatpush1.bf16.msra.mxu0 0
    %1073 = vmatprep.subr.bf16.mxu0 0
    %1074 = vmatpush1.bf16.msra.mxu0 0
    %1075 = vmatprep.subr.bf16.mxu0 0
    %1076 = vmatpush1.bf16.msra.mxu0 0
    %1077 = vmatprep.subr.bf16.mxu0 0
    %1078 = vmatpush1.bf16.msra.mxu0 0
    %1079 = vmatprep.subr.bf16.mxu0 0
    %1080 = vmatpush1.bf16.msra.mxu0 0
    %1081 = vmatprep.subr.bf16.mxu0 0
    %1082 = vmatpush1.bf16.msra.mxu0 0
    %1083 = vmatprep.subr.bf16.mxu0 0
    %1084 = vmatpush1.bf16.msra.mxu0 0
    %1085 = vmatprep.subr.bf16.mxu0 0
    %1086 = vmatpush1.bf16.msra.mxu0 0
    %1087 = vmatprep.subr.bf16.mxu0 0
    %1088 = vmatpush1.bf16.msra.mxu0 0
    %1089 = vmatprep.subr.bf16.mxu0 0
    %1090 = vmatpush1.bf16.msra.mxu0 0
    %1091 = vmatprep.subr.bf16.mxu0 0
    %1092 = vmatpush1.bf16.msra.mxu0 0
    %1093 = vmatprep.subr.bf16.mxu0 0
    %1094 = vmatpush1.bf16.msra.mxu0 0
    %1095 = vmatprep.subr.bf16.mxu0 0
    %1096 = vmatpush1.bf16.msra.mxu0 0
    %1097 = vmatprep.mubr.bf16.mxu0 0
    %1098 = vmatmul.mubr.bf16.gmra.mrb[0].mxu0 %v1063
    %v1099 = vpop.f32.mrb[0].mxu0
    %v1100 = vadd.f32 0.0, %v1099
    %v1101 = vpop.f32.mrb[0].mxu0
    %v1102 = vpop.f32.mrb[0].mxu0
    %v1103 = vpop.f32.mrb[0].mxu0
    %1104 = vdwg.mxu0
    %v1105 = vadd.f32 %v810, %v1100
    %v1106 = vxor.u32 %v1105, 2147483648
    %v1107 = vmul.f32 %v1106, 1.442695
    %v1108 = vpow.pop %v1107
    %v1109 = vadd.f32 %v1108, 1.0
    %v1110 = vrcp.pop %v1109
    %v1111 = vmul.f32 1.0, %v1110
    %v1112 = vtanh.pop %v1105
    %v1113 = vmul.f32 %v1111, %v1051
    %1115 = vrot.lane.b32.xlu0 %v1112, 64
    %v1116 = vpop.permute.xlu0 %1115
    %v1118 = vmul.f32 %v1111, %v1116
    %1120 = vrot.lane.b32.xlu0 %v1118, 32
    %v1121 = vpop.permute.xlu0 %1120
    %v1123 = vadd.f32 %v1113, %v1121
    %v1124 = vtanh.pop %v1123
    %1126 = vrot.lane.b32.xlu0 %v1124, 64
    %v1127 = vpop.permute.xlu0 %1126
    %v1129 = vmul.f32 %v1111, %v1127
    %v1130 = vpack.c.bf16 %v1129, %v1129
    %1132 = vrot.lane.b32.xlu0 %v1130, 32
    %v1133 = vpop.permute.xlu0 %1132
    %v1135 = vsel %vm845, %v1133, 0
    %1137 = vmatprep.subr.bf16.mxu0 0
    %1138 = vmatpush1.bf16.msra.mxu0 %v841
    %1139 = vmatprep.subr.bf16.mxu0 0
    %1140 = vmatpush1.bf16.msra.mxu0 %v842
    %1141 = vmatprep.subr.bf16.mxu0 0
    %1142 = vmatpush1.bf16.msra.mxu0 0
    %1143 = vmatprep.subr.bf16.mxu0 0
    %1144 = vmatpush1.bf16.msra.mxu0 0
    %1145 = vmatprep.subr.bf16.mxu0 0
    %1146 = vmatpush1.bf16.msra.mxu0 0
    %1147 = vmatprep.subr.bf16.mxu0 0
    %1148 = vmatpush1.bf16.msra.mxu0 0
    %1149 = vmatprep.subr.bf16.mxu0 0
    %1150 = vmatpush1.bf16.msra.mxu0 0
    %1151 = vmatprep.subr.bf16.mxu0 0
    %1152 = vmatpush1.bf16.msra.mxu0 0
    %1153 = vmatprep.subr.bf16.mxu0 0
    %1154 = vmatpush1.bf16.msra.mxu0 0
    %1155 = vmatprep.subr.bf16.mxu0 0
    %1156 = vmatpush1.bf16.msra.mxu0 0
    %1157 = vmatprep.subr.bf16.mxu0 0
    %1158 = vmatpush1.bf16.msra.mxu0 0
    %1159 = vmatprep.subr.bf16.mxu0 0
    %1160 = vmatpush1.bf16.msra.mxu0 0
    %1161 = vmatprep.subr.bf16.mxu0 0
    %1162 = vmatpush1.bf16.msra.mxu0 0
    %1163 = vmatprep.subr.bf16.mxu0 0
    %1164 = vmatpush1.bf16.msra.mxu0 0
    %1165 = vmatprep.subr.bf16.mxu0 0
    %1166 = vmatpush1.bf16.msra.mxu0 0
    %1167 = vmatprep.subr.bf16.mxu0 0
    %1168 = vmatpush1.bf16.msra.mxu0 0
    %1169 = vmatprep.mubr.bf16.mxu0 0
    %1170 = vmatmul.mubr.bf16.gmra.mrb[0].mxu0 %v1135
    %v1171 = vpop.f32.mrb[0].mxu0
    %v1172 = vadd.f32 0.0, %v1171
    %v1173 = vpop.f32.mrb[0].mxu0
    %v1174 = vpop.f32.mrb[0].mxu0
    %v1175 = vpop.f32.mrb[0].mxu0
    %1176 = vdwg.mxu0
    %v1177 = vadd.f32 %v815, %v1172
    %v1178 = vxor.u32 %v1177, 2147483648
    %v1179 = vmul.f32 %v1178, 1.442695
    %v1180 = vpow.pop %v1179
    %v1181 = vadd.f32 %v1180, 1.0
    %v1182 = vrcp.pop %v1181
    %v1183 = vmul.f32 1.0, %v1182
    %v1184 = vtanh.pop %v1177
    %v1185 = vmul.f32 %v1183, %v1123
    %1187 = vrot.lane.b32.xlu0 %v1184, 64
    %v1188 = vpop.permute.xlu0 %1187
    %v1190 = vmul.f32 %v1183, %v1188
    %1192 = vrot.lane.b32.xlu0 %v1190, 32
    %v1193 = vpop.permute.xlu0 %1192
    %v1195 = vadd.f32 %v1185, %v1193
    %v1196 = vtanh.pop %v1195
    %1198 = vrot.lane.b32.xlu0 %v1196, 64
    %v1199 = vpop.permute.xlu0 %1198
    %v1201 = vmul.f32 %v1183, %v1199
    %v1202 = vpack.c.bf16 %v1201, %v1201
    %1204 = vrot.lane.b32.xlu0 %v1202, 32
    %v1205 = vpop.permute.xlu0 %1204
    %v1207 = vsel %vm845, %v1205, 0
    %1209 = vmatprep.subr.bf16.mxu0 0
    %1210 = vmatpush1.bf16.msra.mxu0 %v841
    %1211 = vmatprep.subr.bf16.mxu0 0
    %1212 = vmatpush1.bf16.msra.mxu0 %v842
    %1213 = vmatprep.subr.bf16.mxu0 0
    %1214 = vmatpush1.bf16.msra.mxu0 0
    %1215 = vmatprep.subr.bf16.mxu0 0
    %1216 = vmatpush1.bf16.msra.mxu0 0
    %1217 = vmatprep.subr.bf16.mxu0 0
    %1218 = vmatpush1.bf16.msra.mxu0 0
    %1219 = vmatprep.subr.bf16.mxu0 0
    %1220 = vmatpush1.bf16.msra.mxu0 0
    %1221 = vmatprep.subr.bf16.mxu0 0
    %1222 = vmatpush1.bf16.msra.mxu0 0
    %1223 = vmatprep.subr.bf16.mxu0 0
    %1224 = vmatpush1.bf16.msra.mxu0 0
    %1225 = vmatprep.subr.bf16.mxu0 0
    %1226 = vmatpush1.bf16.msra.mxu0 0
    %1227 = vmatprep.subr.bf16.mxu0 0
    %1228 = vmatpush1.bf16.msra.mxu0 0
    %1229 = vmatprep.subr.bf16.mxu0 0
    %1230 = vmatpush1.bf16.msra.mxu0 0
    %1231 = vmatprep.subr.bf16.mxu0 0
    %1232 = vmatpush1.bf16.msra.mxu0 0
    %1233 = vmatprep.subr.bf16.mxu0 0
    %1234 = vmatpush1.bf16.msra.mxu0 0
    %1235 = vmatprep.subr.bf16.mxu0 0
    %1236 = vmatpush1.bf16.msra.mxu0 0
    %1237 = vmatprep.subr.bf16.mxu0 0
    %1238 = vmatpush1.bf16.msra.mxu0 0
    %1239 = vmatprep.subr.bf16.mxu0 0
    %1240 = vmatpush1.bf16.msra.mxu0 0
    %1241 = vmatprep.mubr.bf16.mxu0 0
    %1242 = vmatmul.mubr.bf16.gmra.mrb[0].mxu0 %v1207
    %v1243 = vpop.f32.mrb[0].mxu0
    %v1244 = vadd.f32 0.0, %v1243
    %v1245 = vpop.f32.mrb[0].mxu0
    %v1246 = vpop.f32.mrb[0].mxu0
    %v1247 = vpop.f32.mrb[0].mxu0
    %1248 = vdwg.mxu0
    %v1249 = vadd.f32 %v818, %v1244
    %v1250 = vxor.u32 %v1249, 2147483648
    %v1251 = vmul.f32 %v1250, 1.442695
    %v1252 = vpow.pop %v1251
    %v1253 = vadd.f32 %v1252, 1.0
    %v1254 = vrcp.pop %v1253
    %v1255 = vmul.f32 1.0, %v1254
    %v1256 = vtanh.pop %v1249
    %v1257 = vmul.f32 %v1255, %v1195
    %1259 = vrot.lane.b32.xlu0 %v1256, 64
    %v1260 = vpop.permute.xlu0 %1259
    %v1262 = vmul.f32 %v1255, %v1260
    %1264 = vrot.lane.b32.xlu0 %v1262, 32
    %v1265 = vpop.permute.xlu0 %1264
    %v1267 = vadd.f32 %v1257, %v1265
    %v1268 = vtanh.pop %v1267
    %1270 = vrot.lane.b32.xlu0 %v1268, 64
    %v1271 = vpop.permute.xlu0 %1270
    %v1273 = vmul.f32 %v1255, %v1271
    %v1274 = vpack.c.bf16 %v1273, %v1273
    %1276 = vrot.lane.b32.xlu0 %v1274, 32
    %v1277 = vpop.permute.xlu0 %1276
    %v1279 = vsel %vm845, %v1277, 0
    %1281 = vmatprep.subr.bf16.mxu0 0
    %1282 = vmatpush1.bf16.msra.mxu0 %v841
    %1283 = vmatprep.subr.bf16.mxu0 0
    %1284 = vmatpush1.bf16.msra.mxu0 %v842
    %1285 = vmatprep.subr.bf16.mxu0 0
    %1286 = vmatpush1.bf16.msra.mxu0 0
    %1287 = vmatprep.subr.bf16.mxu0 0
    %1288 = vmatpush1.bf16.msra.mxu0 0
    %1289 = vmatprep.subr.bf16.mxu0 0
    %1290 = vmatpush1.bf16.msra.mxu0 0
    %1291 = vmatprep.subr.bf16.mxu0 0
    %1292 = vmatpush1.bf16.msra.mxu0 0
    %1293 = vmatprep.subr.bf16.mxu0 0
    %1294 = vmatpush1.bf16.msra.mxu0 0
    %1295 = vmatprep.subr.bf16.mxu0 0
    %1296 = vmatpush1.bf16.msra.mxu0 0
    %1297 = vmatprep.subr.bf16.mxu0 0
    %1298 = vmatpush1.bf16.msra.mxu0 0
    %1299 = vmatprep.subr.bf16.mxu0 0
    %1300 = vmatpush1.bf16.msra.mxu0 0
    %1301 = vmatprep.subr.bf16.mxu0 0
    %1302 = vmatpush1.bf16.msra.mxu0 0
    %1303 = vmatprep.subr.bf16.mxu0 0
    %1304 = vmatpush1.bf16.msra.mxu0 0
    %1305 = vmatprep.subr.bf16.mxu0 0
    %1306 = vmatpush1.bf16.msra.mxu0 0
    %1307 = vmatprep.subr.bf16.mxu0 0
    %1308 = vmatpush1.bf16.msra.mxu0 0
    %1309 = vmatprep.subr.bf16.mxu0 0
    %1310 = vmatpush1.bf16.msra.mxu0 0
    %1311 = vmatprep.subr.bf16.mxu0 0
    %1312 = vmatpush1.bf16.msra.mxu0 0
    %1313 = vmatprep.mubr.bf16.mxu0 0
    %1314 = vmatmul.mubr.bf16.gmra.mrb[0].mxu0 %v1279
    %v1315 = vpop.f32.mrb[0].mxu0
    %v1316 = vadd.f32 0.0, %v1315
    %v1317 = vpop.f32.mrb[0].mxu0
    %v1318 = vpop.f32.mrb[0].mxu0
    %v1319 = vpop.f32.mrb[0].mxu0
    %1320 = vdwg.mxu0
    %v1321 = vadd.f32 %v823, %v1316
    %v1322 = vxor.u32 %v1321, 2147483648
    %v1323 = vmul.f32 %v1322, 1.442695
    %v1324 = vpow.pop %v1323
    %v1325 = vadd.f32 %v1324, 1.0
    %v1326 = vrcp.pop %v1325
    %v1327 = vmul.f32 1.0, %v1326
    %v1328 = vtanh.pop %v1321
    %v1329 = vmul.f32 %v1327, %v1267
    %1331 = vrot.lane.b32.xlu0 %v1328, 64
    %v1332 = vpop.permute.xlu0 %1331
    %v1334 = vmul.f32 %v1327, %v1332
    %1336 = vrot.lane.b32.xlu0 %v1334, 32
    %v1337 = vpop.permute.xlu0 %1336
    %v1339 = vadd.f32 %v1329, %v1337
    %v1340 = vtanh.pop %v1339
    %1342 = vrot.lane.b32.xlu0 %v1340, 64
    %v1343 = vpop.permute.xlu0 %1342
    %v1345 = vmul.f32 %v1327, %v1343
    %v1346 = vpack.c.bf16 %v1345, %v1345
    %1348 = vrot.lane.b32.xlu0 %v1346, 32
    %v1349 = vpop.permute.xlu0 %1348
    %v1351 = vsel %vm845, %v1349, 0
    %1353 = vmatprep.subr.bf16.mxu0 0
    %1354 = vmatpush1.bf16.msra.mxu0 %v841
    %1355 = vmatprep.subr.bf16.mxu0 0
    %1356 = vmatpush1.bf16.msra.mxu0 %v842
    %1357 = vmatprep.subr.bf16.mxu0 0
    %1358 = vmatpush1.bf16.msra.mxu0 0
    %1359 = vmatprep.subr.bf16.mxu0 0
    %1360 = vmatpush1.bf16.msra.mxu0 0
    %1361 = vmatprep.subr.bf16.mxu0 0
    %1362 = vmatpush1.bf16.msra.mxu0 0
    %1363 = vmatprep.subr.bf16.mxu0 0
    %1364 = vmatpush1.bf16.msra.mxu0 0
    %1365 = vmatprep.subr.bf16.mxu0 0
    %1366 = vmatpush1.bf16.msra.mxu0 0
    %1367 = vmatprep.subr.bf16.mxu0 0
    %1368 = vmatpush1.bf16.msra.mxu0 0
    %1369 = vmatprep.subr.bf16.mxu0 0
    %1370 = vmatpush1.bf16.msra.mxu0 0
    %1371 = vmatprep.subr.bf16.mxu0 0
    %1372 = vmatpush1.bf16.msra.mxu0 0
    %1373 = vmatprep.subr.bf16.mxu0 0
    %1374 = vmatpush1.bf16.msra.mxu0 0
    %1375 = vmatprep.subr.bf16.mxu0 0
    %1376 = vmatpush1.bf16.msra.mxu0 0
    %1377 = vmatprep.subr.bf16.mxu0 0
    %1378 = vmatpush1.bf16.msra.mxu0 0
    %1379 = vmatprep.subr.bf16.mxu0 0
    %1380 = vmatpush1.bf16.msra.mxu0 0
    %1381 = vmatprep.subr.bf16.mxu0 0
    %1382 = vmatpush1.bf16.msra.mxu0 0
    %1383 = vmatprep.subr.bf16.mxu0 0
    %1384 = vmatpush1.bf16.msra.mxu0 0
    %1385 = vmatprep.mubr.bf16.mxu0 0
    %1386 = vmatmul.mubr.bf16.gmra.mrb[0].mxu0 %v1351
    %v1387 = vpop.f32.mrb[0].mxu0
    %v1388 = vadd.f32 0.0, %v1387
    %v1389 = vpop.f32.mrb[0].mxu0
    %v1390 = vpop.f32.mrb[0].mxu0
    %v1391 = vpop.f32.mrb[0].mxu0
    %1392 = vdwg.mxu0
    %v1393 = vadd.f32 %v826, %v1388
    %v1394 = vxor.u32 %v1393, 2147483648
    %v1395 = vmul.f32 %v1394, 1.442695
    %v1396 = vpow.pop %v1395
    %v1397 = vadd.f32 %v1396, 1.0
    %v1398 = vrcp.pop %v1397
    %v1399 = vmul.f32 1.0, %v1398
    %v1400 = vtanh.pop %v1393
    %v1401 = vmul.f32 %v1399, %v1339
    %1403 = vrot.lane.b32.xlu0 %v1400, 64
    %v1404 = vpop.permute.xlu0 %1403
    %v1406 = vmul.f32 %v1399, %v1404
    %1408 = vrot.lane.b32.xlu0 %v1406, 32
    %v1409 = vpop.permute.xlu0 %1408
    %v1411 = vadd.f32 %v1401, %v1409
    %v1412 = vtanh.pop %v1411
    %1414 = vrot.lane.b32.xlu0 %v1412, 64
    %v1415 = vpop.permute.xlu0 %1414
    %v1417 = vmul.f32 %v1399, %v1415
    %1419 = vrot.lane.b32.xlu0 %v913, 32
    %v1420 = vpop.permute.xlu0 %1419
    %1423 = vrot.lane.b32.xlu0 %v985, 32
    %v1424 = vpop.permute.xlu0 %1423
    %1427 = vrot.lane.b32.xlu0 %v1057, 32
    %v1428 = vpop.permute.xlu0 %1427
    %1431 = vrot.lane.b32.xlu0 %v1129, 32
    %v1432 = vpop.permute.xlu0 %1431
    %1435 = vrot.lane.b32.xlu0 %v1201, 32
    %v1436 = vpop.permute.xlu0 %1435
    %1439 = vrot.lane.b32.xlu0 %v1273, 32
    %v1440 = vpop.permute.xlu0 %1439
    %1443 = vrot.lane.b32.xlu0 %v1345, 32
    %v1444 = vpop.permute.xlu0 %1443
    %v1446 = vpack.c.bf16 %v1420, 0.0
    %v1447 = vpack.c.bf16 %v1428, %v1424
    %v1448 = vpack.c.bf16 %v1436, %v1432
    %v1449 = vpack.c.bf16 %v1444, %v1440
    %v1450 = vpack.c.bf16 %v985, %v913
    %v1451 = vpack.c.bf16 %v1129, %v1057
    %v1452 = vpack.c.bf16 %v1273, %v1201
    %v1453 = vpack.c.bf16 %v1417, %v1345
    %v1454 = vpack.c.bf16 %v1057, %v985
    %v1455 = vpack.c.bf16 %v1201, %v1129
    %v1456 = vpack.c.bf16 %v1345, %v1273
    %v1457 = vpack.c.bf16 0.0, %v1417
    %v1458 = vld [vmem:[#allocation8] sm:$0xf]
    %v1459 = vld [vmem:[#allocation8 + $0x4] sm:$0xf]
    %v1460 = vld [vmem:[#allocation8 + $0x8] sm:$0xf]
    %v1461 = vld [vmem:[#allocation8 + $0xc] sm:$0xf]
    %s1462 = scalar_lea.vmem [#allocation8], 16
    %v1463 = vld [vmem:[%s1462] sm:$0xf]
    %v1464 = vld [vmem:[%s1462 + $0x4] sm:$0xf]
    %v1465 = vld [vmem:[%s1462 + $0x8] sm:$0xf]
    %v1466 = vld [vmem:[%s1462 + $0xc] sm:$0xf]
    %1471 = vrot.lane.b32.xlu0 %v1450, 32
    %v1472 = vpop.permute.xlu0 %1471
    %1473 = vrot.lane.b32.xlu0 %v1451, 32
    %v1474 = vpop.permute.xlu0 %1473
    %1475 = vrot.lane.b32.xlu0 %v1452, 32
    %v1476 = vpop.permute.xlu0 %1475
    %1477 = vrot.lane.b32.xlu0 %v1453, 32
    %v1478 = vpop.permute.xlu0 %1477
    %v1483 = vunpack.c.l.b16 %v1463
    %v1484 = vunpack.c.l.b16 %v1464
    %v1485 = vunpack.c.l.b16 %v1465
    %v1486 = vunpack.c.l.b16 %v1466
    %v1487 = vpack.c.b16 %v1484, %v1483
    %v1488 = vpack.c.b16 %v1486, %v1485
    %v1492 = vsel %vm845, %v1472, 0
    %v1495 = vsel %vm845, %v1474, 0
    %v1498 = vsel %vm845, %v1476, 0
    %v1501 = vsel %vm845, %v1478, 0
    %1503 = vmatprep.subr.bf16.mxu0 0
    %1504 = vmatpush1.bf16.msra.mxu0 %v1487
    %1505 = vmatprep.subr.bf16.mxu0 0
    %1506 = vmatpush1.bf16.msra.mxu0 %v1488
    %1507 = vmatprep.subr.bf16.mxu0 0
    %1508 = vmatpush1.bf16.msra.mxu0 0
    %1509 = vmatprep.subr.bf16.mxu0 0
    %1510 = vmatpush1.bf16.msra.mxu0 0
    %1511 = vmatprep.subr.bf16.mxu0 0
    %1512 = vmatpush1.bf16.msra.mxu0 0
    %1513 = vmatprep.subr.bf16.mxu0 0
    %1514 = vmatpush1.bf16.msra.mxu0 0
    %1515 = vmatprep.subr.bf16.mxu0 0
    %1516 = vmatpush1.bf16.msra.mxu0 0
    %1517 = vmatprep.subr.bf16.mxu0 0
    %1518 = vmatpush1.bf16.msra.mxu0 0
    %1519 = vmatprep.subr.bf16.mxu0 0
    %1520 = vmatpush1.bf16.msra.mxu0 0
    %1521 = vmatprep.subr.bf16.mxu0 0
    %1522 = vmatpush1.bf16.msra.mxu0 0
    %1523 = vmatprep.subr.bf16.mxu0 0
    %1524 = vmatpush1.bf16.msra.mxu0 0
    %1525 = vmatprep.subr.bf16.mxu0 0
    %1526 = vmatpush1.bf16.msra.mxu0 0
    %1527 = vmatprep.subr.bf16.mxu0 0
    %1528 = vmatpush1.bf16.msra.mxu0 0
    %1529 = vmatprep.subr.bf16.mxu0 0
    %1530 = vmatpush1.bf16.msra.mxu0 0
    %1531 = vmatprep.subr.bf16.mxu0 0
    %1532 = vmatpush1.bf16.msra.mxu0 0
    %1533 = vmatprep.subr.bf16.mxu0 0
    %1534 = vmatpush1.bf16.msra.mxu0 0
    %1535 = vmatprep.mubr.bf16.mxu0 0
    %1536 = vmatmul.mubr.bf16.gmra.mrb[0].mxu0 %v1492
    %v1537 = vpop.f32.mrb[0].mxu0
    %v1538 = vadd.f32 0.0, %v1537
    %v1539 = vpop.f32.mrb[0].mxu0
    %v1540 = vpop.f32.mrb[0].mxu0
    %v1541 = vadd.f32 0.0, %v1540
    %v1542 = vpop.f32.mrb[0].mxu0
    %1543 = vmatprep.mubr.bf16.mxu0 0
    %1544 = vmatmul.mubr.bf16.gmra.mrb[0].mxu0 %v1495
    %v1545 = vpop.f32.mrb[0].mxu0
    %v1546 = vadd.f32 0.0, %v1545
    %v1547 = vpop.f32.mrb[0].mxu0
    %v1548 = vpop.f32.mrb[0].mxu0
    %v1549 = vadd.f32 0.0, %v1548
    %v1550 = vpop.f32.mrb[0].mxu0
    %1551 = vmatprep.mubr.bf16.mxu0 0
    %1552 = vmatmul.mubr.bf16.gmra.mrb[0].mxu0 %v1498
    %v1553 = vpop.f32.mrb[0].mxu0
    %v1554 = vadd.f32 0.0, %v1553
    %v1555 = vpop.f32.mrb[0].mxu0
    %v1556 = vpop.f32.mrb[0].mxu0
    %v1557 = vadd.f32 0.0, %v1556
    %v1558 = vpop.f32.mrb[0].mxu0
    %1559 = vmatprep.mubr.bf16.mxu0 0
    %1560 = vmatmul.mubr.bf16.gmra.mrb[0].mxu0 %v1501
    %v1561 = vpop.f32.mrb[0].mxu0
    %v1562 = vadd.f32 0.0, %v1561
    %v1563 = vpop.f32.mrb[0].mxu0
    %v1564 = vpop.f32.mrb[0].mxu0
    %v1565 = vadd.f32 0.0, %v1564
    %v1566 = vpop.f32.mrb[0].mxu0
    %1567 = vdwg.mxu0
    %v1572 = vunpack.c.l.b16 %v1458
    %v1573 = vunpack.c.l.b16 %v1459
    %v1574 = vunpack.c.l.b16 %v1460
    %v1575 = vunpack.c.l.b16 %v1461
    %v1576 = vpack.c.b16 %v1573, %v1572
    %v1577 = vpack.c.b16 %v1575, %v1574
    %v1581 = vsel %vm845, %v1446, 0
    %v1584 = vsel %vm845, %v1447, 0
    %v1587 = vsel %vm845, %v1448, 0
    %v1590 = vsel %vm845, %v1449, 0
    %1592 = vmatprep.subr.bf16.mxu0 0
    %1593 = vmatpush1.bf16.msra.mxu0 %v1576
    %1594 = vmatprep.subr.bf16.mxu0 0
    %1595 = vmatpush1.bf16.msra.mxu0 %v1577
    %1596 = vmatprep.subr.bf16.mxu0 0
    %1597 = vmatpush1.bf16.msra.mxu0 0
    %1598 = vmatprep.subr.bf16.mxu0 0
    %1599 = vmatpush1.bf16.msra.mxu0 0
    %1600 = vmatprep.subr.bf16.mxu0 0
    %1601 = vmatpush1.bf16.msra.mxu0 0
    %1602 = vmatprep.subr.bf16.mxu0 0
    %1603 = vmatpush1.bf16.msra.mxu0 0
    %1604 = vmatprep.subr.bf16.mxu0 0
    %1605 = vmatpush1.bf16.msra.mxu0 0
    %1606 = vmatprep.subr.bf16.mxu0 0
    %1607 = vmatpush1.bf16.msra.mxu0 0
    %1608 = vmatprep.subr.bf16.mxu0 0
    %1609 = vmatpush1.bf16.msra.mxu0 0
    %1610 = vmatprep.subr.bf16.mxu0 0
    %1611 = vmatpush1.bf16.msra.mxu0 0
    %1612 = vmatprep.subr.bf16.mxu0 0
    %1613 = vmatpush1.bf16.msra.mxu0 0
    %1614 = vmatprep.subr.bf16.mxu0 0
    %1615 = vmatpush1.bf16.msra.mxu0 0
    %1616 = vmatprep.subr.bf16.mxu0 0
    %1617 = vmatpush1.bf16.msra.mxu0 0
    %1618 = vmatprep.subr.bf16.mxu0 0
    %1619 = vmatpush1.bf16.msra.mxu0 0
    %1620 = vmatprep.subr.bf16.mxu0 0
    %1621 = vmatpush1.bf16.msra.mxu0 0
    %1622 = vmatprep.subr.bf16.mxu0 0
    %1623 = vmatpush1.bf16.msra.mxu0 0
    %1624 = vmatprep.mubr.bf16.mxu0 0
    %1625 = vmatmul.mubr.bf16.gmra.mrb[0].mxu0 %v1581
    %v1626 = vpop.f32.mrb[0].mxu0
    %v1627 = vadd.f32 %v1538, %v1626
    %v1628 = vpop.f32.mrb[0].mxu0
    %v1629 = vpop.f32.mrb[0].mxu0
    %v1630 = vadd.f32 %v1541, %v1629
    %v1631 = vpop.f32.mrb[0].mxu0
    %1632 = vmatprep.mubr.bf16.mxu0 0
    %1633 = vmatmul.mubr.bf16.gmra.mrb[0].mxu0 %v1584
    %v1634 = vpop.f32.mrb[0].mxu0
    %v1635 = vadd.f32 %v1546, %v1634
    %v1636 = vpop.f32.mrb[0].mxu0
    %v1637 = vpop.f32.mrb[0].mxu0
    %v1638 = vadd.f32 %v1549, %v1637
    %v1639 = vpop.f32.mrb[0].mxu0
    %1640 = vmatprep.mubr.bf16.mxu0 0
    %1641 = vmatmul.mubr.bf16.gmra.mrb[0].mxu0 %v1587
    %v1642 = vpop.f32.mrb[0].mxu0
    %v1643 = vadd.f32 %v1554, %v1642
    %v1644 = vpop.f32.mrb[0].mxu0
    %v1645 = vpop.f32.mrb[0].mxu0
    %v1646 = vadd.f32 %v1557, %v1645
    %v1647 = vpop.f32.mrb[0].mxu0
    %1648 = vmatprep.mubr.bf16.mxu0 0
    %1649 = vmatmul.mubr.bf16.gmra.mrb[0].mxu0 %v1590
    %v1650 = vpop.f32.mrb[0].mxu0
    %v1651 = vadd.f32 %v1562, %v1650
    %v1652 = vpop.f32.mrb[0].mxu0
    %v1653 = vpop.f32.mrb[0].mxu0
    %v1654 = vadd.f32 %v1565, %v1653
    %v1655 = vpop.f32.mrb[0].mxu0
    %1656 = vdwg.mxu0
    %s1657 = scalar_lea.vmem [#allocation8], 32
    %v1658 = vld [vmem:[%s1657] sm:$0xf]
    %v1659 = vld [vmem:[%s1657 + $0x4] sm:$0xf]
    %v1660 = vld [vmem:[%s1657 + $0x8] sm:$0xf]
    %v1661 = vld [vmem:[%s1657 + $0xc] sm:$0xf]
    %1666 = vrot.lane.b32.xlu0 %v1454, 32
    %v1667 = vpop.permute.xlu0 %1666
    %1668 = vrot.lane.b32.xlu0 %v1455, 32
    %v1669 = vpop.permute.xlu0 %1668
    %1670 = vrot.lane.b32.xlu0 %v1456, 32
    %v1671 = vpop.permute.xlu0 %1670
    %1672 = vrot.lane.b32.xlu0 %v1457, 32
    %v1673 = vpop.permute.xlu0 %1672
    %v1678 = vunpack.c.l.b16 %v1658
    %v1679 = vunpack.c.l.b16 %v1659
    %v1680 = vunpack.c.l.b16 %v1660
    %v1681 = vunpack.c.l.b16 %v1661
    %v1682 = vpack.c.b16 %v1679, %v1678
    %v1683 = vpack.c.b16 %v1681, %v1680
    %v1687 = vsel %vm845, %v1667, 0
    %v1690 = vsel %vm845, %v1669, 0
    %v1693 = vsel %vm845, %v1671, 0
    %v1696 = vsel %vm845, %v1673, 0
    %1698 = vmatprep.subr.bf16.mxu0 0
    %1699 = vmatpush1.bf16.msra.mxu0 %v1682
    %1700 = vmatprep.subr.bf16.mxu0 0
    %1701 = vmatpush1.bf16.msra.mxu0 %v1683
    %1702 = vmatprep.subr.bf16.mxu0 0
    %1703 = vmatpush1.bf16.msra.mxu0 0
    %1704 = vmatprep.subr.bf16.mxu0 0
    %1705 = vmatpush1.bf16.msra.mxu0 0
    %1706 = vmatprep.subr.bf16.mxu0 0
    %1707 = vmatpush1.bf16.msra.mxu0 0
    %1708 = vmatprep.subr.bf16.mxu0 0
    %1709 = vmatpush1.bf16.msra.mxu0 0
    %1710 = vmatprep.subr.bf16.mxu0 0
    %1711 = vmatpush1.bf16.msra.mxu0 0
    %1712 = vmatprep.subr.bf16.mxu0 0
    %1713 = vmatpush1.bf16.msra.mxu0 0
    %1714 = vmatprep.subr.bf16.mxu0 0
    %1715 = vmatpush1.bf16.msra.mxu0 0
    %1716 = vmatprep.subr.bf16.mxu0 0
    %1717 = vmatpush1.bf16.msra.mxu0 0
    %1718 = vmatprep.subr.bf16.mxu0 0
    %1719 = vmatpush1.bf16.msra.mxu0 0
    %1720 = vmatprep.subr.bf16.mxu0 0
    %1721 = vmatpush1.bf16.msra.mxu0 0
    %1722 = vmatprep.subr.bf16.mxu0 0
    %1723 = vmatpush1.bf16.msra.mxu0 0
    %1724 = vmatprep.subr.bf16.mxu0 0
    %1725 = vmatpush1.bf16.msra.mxu0 0
    %1726 = vmatprep.subr.bf16.mxu0 0
    %1727 = vmatpush1.bf16.msra.mxu0 0
    %1728 = vmatprep.subr.bf16.mxu0 0
    %1729 = vmatpush1.bf16.msra.mxu0 0
    %1730 = vmatprep.mubr.bf16.mxu0 0
    %1731 = vmatmul.mubr.bf16.gmra.mrb[0].mxu0 %v1687
    %v1732 = vpop.f32.mrb[0].mxu0
    %v1733 = vadd.f32 0.0, %v1732
    %v1734 = vpop.f32.mrb[0].mxu0
    %v1735 = vpop.f32.mrb[0].mxu0
    %v1736 = vadd.f32 0.0, %v1735
    %v1737 = vpop.f32.mrb[0].mxu0
    %1738 = vmatprep.mubr.bf16.mxu0 0
    %1739 = vmatmul.mubr.bf16.gmra.mrb[0].mxu0 %v1690
    %v1740 = vpop.f32.mrb[0].mxu0
    %v1741 = vadd.f32 0.0, %v1740
    %v1742 = vpop.f32.mrb[0].mxu0
    %v1743 = vpop.f32.mrb[0].mxu0
    %v1744 = vadd.f32 0.0, %v1743
    %v1745 = vpop.f32.mrb[0].mxu0
    %1746 = vmatprep.mubr.bf16.mxu0 0
    %1747 = vmatmul.mubr.bf16.gmra.mrb[0].mxu0 %v1693
    %v1748 = vpop.f32.mrb[0].mxu0
    %v1749 = vadd.f32 0.0, %v1748
    %v1750 = vpop.f32.mrb[0].mxu0
    %v1751 = vpop.f32.mrb[0].mxu0
    %v1752 = vadd.f32 0.0, %v1751
    %v1753 = vpop.f32.mrb[0].mxu0
    %1754 = vmatprep.mubr.bf16.mxu0 0
    %1755 = vmatmul.mubr.bf16.gmra.mrb[0].mxu0 %v1696
    %v1756 = vpop.f32.mrb[0].mxu0
    %v1757 = vadd.f32 0.0, %v1756
    %v1758 = vpop.f32.mrb[0].mxu0
    %v1759 = vpop.f32.mrb[0].mxu0
    %v1760 = vadd.f32 0.0, %v1759
    %v1761 = vpop.f32.mrb[0].mxu0
    %1762 = vdwg.mxu0
    %v1763 = vadd.f32 %v1627, %v1733
    %v1764 = vadd.f32 %v1630, %v1736
    %v1765 = vadd.f32 %v1635, %v1741
    %v1766 = vadd.f32 %v1638, %v1744
    %v1767 = vadd.f32 %v1643, %v1749
    %v1768 = vadd.f32 %v1646, %v1752
    %v1769 = vadd.f32 %v1651, %v1757
    %v1770 = vadd.f32 %v1654, %v1760
    %v1771 = vld [vmem:[%s5] sm:$0x1]
    %v1773 = vlaneseq
    %v1774 = vshrl.u32 %v1773, 7
    %v1775 = vsub.s32 0, %v1774
    %v1776 = vrot.slane %v1771, %v1775
    %v1778 = vadd.f32 %v1763, %v1776
    %v1779 = vadd.f32 %v1764, %v1776
    %v1780 = vadd.f32 %v1765, %v1776
    %v1781 = vadd.f32 %v1766, %v1776
    %v1782 = vadd.f32 %v1767, %v1776
    %v1783 = vadd.f32 %v1768, %v1776
    %v1784 = vadd.f32 %v1769, %v1776
    %v1785 = vadd.f32 %v1770, %v1776
    %v1786 = vmax.f32 %v1778, 0.0
    %v1787 = vmax.f32 %v1779, 0.0
    %v1788 = vmax.f32 %v1780, 0.0
    %v1789 = vmax.f32 %v1781, 0.0
    %v1790 = vmax.f32 %v1782, 0.0
    %v1791 = vmax.f32 %v1783, 0.0
    %v1792 = vmax.f32 %v1784, 0.0
    %v1793 = vmax.f32 %v1785, 0.0
    %v1794 = vadd.f32 %v1786, %v1787
    %v1795 = vadd.f32 %v1794, %v1788
    %v1796 = vadd.f32 %v1795, %v1789
    %v1797 = vadd.f32 %v1796, %v1790
    %v1798 = vadd.f32 %v1797, %v1791
    %v1799 = vadd.f32 %v1798, %v1792
    %v1800 = vadd.f32 %v1799, %v1793
    %v1801 = vrcp.pop 8.0
    %v1802 = vmul.f32 %v1800, %v1801
    %v1803 = vpack.c.bf16 %v1802, %v1802
    %v1804 = vld [vmem:[#allocation10] sm:$0xf]
    %v1805 = vld [vmem:[#allocation10 + $0x4] sm:$0xf]
    %v1806 = vld [vmem:[#allocation10 + $0x8] sm:$0xf]
    %v1807 = vld [vmem:[#allocation10 + $0xc] sm:$0xf]
    %v1808 = vld [vmem:[#allocation10 + $0x10] sm:$0xf]
    %v1809 = vld [vmem:[#allocation10 + $0x14] sm:$0xf]
    %v1810 = vld [vmem:[#allocation10 + $0x18] sm:$0xf]
    %v1811 = vld [vmem:[#allocation10 + $0x1c] sm:$0xf]
    %v1812 = vld [vmem:[#allocation10 + $0x20] sm:$0xf]
    %v1813 = vld [vmem:[#allocation10 + $0x24] sm:$0xf]
    %v1814 = vld [vmem:[#allocation10 + $0x28] sm:$0xf]
    %v1815 = vld [vmem:[#allocation10 + $0x2c] sm:$0xf]
    %v1816 = vld [vmem:[#allocation10 + $0x30] sm:$0xf]
    %v1817 = vld [vmem:[#allocation10 + $0x34] sm:$0xf]
    %v1818 = vld [vmem:[#allocation10 + $0x38] sm:$0xf]
    %v1819 = vld [vmem:[#allocation10 + $0x3c] sm:$0xf]
    %v1820 = vld [vmem:[%s7] sm:$0x1]
    %v1822 = vlaneseq
    %v1823 = vshrl.u32 %v1822, 7
    %v1824 = vsub.s32 0, %v1823
    %v1825 = vrot.slane %v1820, %v1824
    %v1843 = vunpack.c.l.b16 %v1804
    %v1844 = vunpack.c.l.b16 %v1805
    %v1845 = vunpack.c.l.b16 %v1806
    %v1846 = vunpack.c.l.b16 %v1807
    %v1847 = vunpack.c.l.b16 %v1808
    %v1848 = vunpack.c.l.b16 %v1809
    %v1849 = vunpack.c.l.b16 %v1810
    %v1850 = vunpack.c.l.b16 %v1811
    %v1851 = vunpack.c.l.b16 %v1812
    %v1852 = vunpack.c.l.b16 %v1813
    %v1853 = vunpack.c.l.b16 %v1814
    %v1854 = vunpack.c.l.b16 %v1815
    %v1855 = vunpack.c.l.b16 %v1816
    %v1856 = vunpack.c.l.b16 %v1817
    %v1857 = vunpack.c.l.b16 %v1818
    %v1858 = vunpack.c.l.b16 %v1819
    %v1859 = vpack.c.b16 %v1844, %v1843
    %v1860 = vpack.c.b16 %v1846, %v1845
    %v1861 = vpack.c.b16 %v1848, %v1847
    %v1862 = vpack.c.b16 %v1850, %v1849
    %v1863 = vpack.c.b16 %v1852, %v1851
    %v1864 = vpack.c.b16 %v1854, %v1853
    %v1865 = vpack.c.b16 %v1856, %v1855
    %v1866 = vpack.c.b16 %v1858, %v1857
    %1875 = vmatprep.subr.bf16.mxu0 0
    %1876 = vmatpush1.bf16.msra.mxu0 %v1859
    %1877 = vmatprep.subr.bf16.mxu0 0
    %1878 = vmatpush1.bf16.msra.mxu0 %v1860
    %1879 = vmatprep.subr.bf16.mxu0 0
    %1880 = vmatpush1.bf16.msra.mxu0 %v1861
    %1881 = vmatprep.subr.bf16.mxu0 0
    %1882 = vmatpush1.bf16.msra.mxu0 %v1862
    %1883 = vmatprep.subr.bf16.mxu0 0
    %1884 = vmatpush1.bf16.msra.mxu0 %v1863
    %1885 = vmatprep.subr.bf16.mxu0 0
    %1886 = vmatpush1.bf16.msra.mxu0 %v1864
    %1887 = vmatprep.subr.bf16.mxu0 0
    %1888 = vmatpush1.bf16.msra.mxu0 %v1865
    %1889 = vmatprep.subr.bf16.mxu0 0
    %1890 = vmatpush1.bf16.msra.mxu0 %v1866
    %1891 = vmatprep.subr.bf16.mxu0 0
    %1892 = vmatpush1.bf16.msra.mxu0 0
    %1893 = vmatprep.subr.bf16.mxu0 0
    %1894 = vmatpush1.bf16.msra.mxu0 0
    %1895 = vmatprep.subr.bf16.mxu0 0
    %1896 = vmatpush1.bf16.msra.mxu0 0
    %1897 = vmatprep.subr.bf16.mxu0 0
    %1898 = vmatpush1.bf16.msra.mxu0 0
    %1899 = vmatprep.subr.bf16.mxu0 0
    %1900 = vmatpush1.bf16.msra.mxu0 0
    %1901 = vmatprep.subr.bf16.mxu0 0
    %1902 = vmatpush1.bf16.msra.mxu0 0
    %1903 = vmatprep.subr.bf16.mxu0 0
    %1904 = vmatpush1.bf16.msra.mxu0 0
    %1905 = vmatprep.subr.bf16.mxu0 0
    %1906 = vmatpush1.bf16.msra.mxu0 0
    %1907 = vmatprep.mubr.bf16.mxu0 0
    %1908 = vmatmul.mubr.bf16.gmra.mrb[0].mxu0 %v1803
    %v1909 = vpop.f32.mrb[0].mxu0
    %v1910 = vadd.f32 %v1825, %v1909
    %v1911 = vpop.f32.mrb[0].mxu0
    %v1912 = vpop.f32.mrb[0].mxu0
    %v1913 = vpop.f32.mrb[0].mxu0
    %1914 = vdwg.mxu0
    %1915 = vst [vmem:[#allocation11] sm:$0xff] %v1910
    // Predicated region
    $region54: #{tpu_custom_call.1} parent=1 // pred_check
      _
    $region55: #{tpu_custom_call.1} parent=1 // pred_check_branch
      %1917 = sbr.rel (0) target = $region57
    $region56: #{tpu_custom_call.1} parent=1 // pred_region
      %s1919 = ssub.s32 128, 128
      %1920 = vsyncadd [#allocation4], %s1919
      %s1922 = sshll.u32 [#allocation11], 4
      %s1923 = int_to_ptr.vmem [resolvable:$true] %s1922
      %1925 = dma.vmem_to_hbm [thread:$0]  %s1923, 128, %s8, [#allocation4]
    $region57: #{tpu_custom_call.1} parent=1 // pred_fallthru
      _
    // Predicated region
    $region58: #{tpu_custom_call.1} parent=1 // pred_check
      _
    $region59: #{tpu_custom_call.1} parent=1 // pred_check_branch
      %1927 = sbr.rel (0) target = $region61
    $region60: #{tpu_custom_call.1} parent=1 // pred_region
      %1928 = dma.done [#allocation4], 128
    $region61: #{tpu_custom_call.1} parent=1 // pred_fallthru
      _
    %1929 = vsyncpa [#allocation3], 1
    %1930 = vsyncpa [#allocation6], 1
    %1931 = vsyncpa [#allocation9], 1
    %1932 = vsyncpa [#allocation4], 1

</llo_original>
